<compile_context>
chip_gen: v7x
topology: tpu7x:2x2x1
jax: 0.10.0
libtpu: 0.0.40
codegen_flags: <defaults>
</compile_context>

<pallas_src>
import functools

import jax
import jax.numpy as jnp
import numpy as np
from jax.experimental import pallas as pl
from jax.experimental.pallas import tpu as pltpu


def _bottleneck_kernel(x_ref, w1_ref, w2_ref, w3_ref,
                       b1_ref, b2_ref, b3_ref, m_ref, o_ref, *, W):
    """conv1x1 -> bias -> relu -> conv3x3 -> bias -> relu -> conv1x1 -> bias
    -> (+identity) -> relu for one image, channels-first (C, H*W) layout.
    BN (eval) scales are pre-folded into the conv weights."""
    HW = x_ref.shape[2]
    Cmid = w1_ref.shape[0]

    x = x_ref[0]                                            # (Cin, HW) bf16

    # ---- conv1 (1x1) + bias + relu -----------------------------------------
    y1 = jnp.dot(w1_ref[...], x, preferred_element_type=jnp.float32)
    y1 = jnp.maximum(y1 + b1_ref[...], 0.0)                 # (Cmid, HW) f32

    # ---- conv2 (3x3, pad=1): 9 shifted matmuls, f32 accumulation ------------
    # Spatial shift (dy, dx) == lane roll of the flattened H*W axis by
    # -(dy*W + dx); out-of-image lanes are zeroed by a precomputed 0/1 mask.
    y2 = jnp.zeros((Cmid, HW), jnp.float32)
    t = 0
    for dy in (-1, 0, 1):
        for dx in (-1, 0, 1):
            off = dy * W + dx
            tap = y1 if off == 0 else pltpu.roll(y1, shift=(-off) % HW, axis=1)
            if not (dy == 0 and dx == 0):
                tap = tap * m_ref[t]                        # (1, HW) boundary mask
            y2 = y2 + jnp.dot(w2_ref[t], tap.astype(jnp.bfloat16),
                              preferred_element_type=jnp.float32)
            t += 1
    y2 = jnp.maximum(y2 + b2_ref[...], 0.0).astype(jnp.bfloat16)   # (Cmid, HW)

    # ---- conv3 (1x1) + bias + identity residual + relu ----------------------
    y3 = jnp.dot(w3_ref[...], y2, preferred_element_type=jnp.float32)
    out = jnp.maximum(y3 + b3_ref[...] + x.astype(jnp.float32), 0.0)
    o_ref[0] = out.astype(o_ref.dtype)                      # lane-dense bf16 store


def _vmem_cap_bytes():
    try:
        return int(pltpu.get_tpu_info().vmem_capacity_bytes)
    except Exception:
        return 64 * 2 ** 20          # conservative fallback (v7x-sized)


def _tap_masks(H, W):
    """(9, 1, H*W) 0/1 masks: mask[t, 0, h*W+w] == 1 iff (h+dy, w+dx) is inside
    the image, for tap t = (dy+1)*3 + (dx+1)."""
    r = np.arange(H * W) // W
    c = np.arange(H * W) % W
    masks = np.zeros((9, 1, H * W), np.float32)
    t = 0
    for dy in (-1, 0, 1):
        for dx in (-1, 0, 1):
            ok = (r + dy >= 0) & (r + dy < H) & (c + dx >= 0) & (c + dx < W)
            masks[t, 0] = ok.astype(np.float32)
            t += 1
    return jnp.asarray(masks)


def bottleneck_forward(x_nchw, params):
    """Bottleneck forward (stride=1, downsample=None, eval-mode BN).
    x_nchw: (N, Cin, H, W) f32 -> (N, Cout*expansion, H, W) bf16."""
    N, Cin, H, W = x_nchw.shape
    Cmid = params["w1"].shape[0]
    Cout = params["w3"].shape[0]
    # TODO(synk): stride>1 / downsample branch not supported here.
    assert Cin == Cout, "identity residual requires in_channels == out_channels*expansion"
    HW = H * W

    # NCHW already has channels-on-sublanes / spatial-on-lanes: a free reshape
    # exposes lane-dense (C, H*W) slabs -- no transpose in wrapper or kernel.
    x = x_nchw.reshape(N, Cin, HW).astype(jnp.bfloat16)
    # w2 is OIHW; per-tap (O, I) matrices in (ky, kx) row-major order.
    w2t = jnp.transpose(params["w2"], (2, 3, 0, 1)).reshape(9, Cmid, Cmid)
    masks = _tap_masks(H, W)

    # Exact VMEM budget: double-buffered x/out tiles (bf16) + (default
    # double-buffered) resident weights/biases/masks + compiler headroom.
    io_bytes = 2 * (Cin * HW * 2 + Cout * HW * 2)
    const_bytes = 2 * ((Cin * Cmid + 9 * Cmid * Cmid + Cmid * Cout) * 2
                       + (2 * Cmid + Cout) * 4 + 9 * HW * 4)
    cap = 40 * 2 ** 20 if _vmem_cap_bytes() <= 64 * 2 ** 20 else 96 * 2 ** 20
    vmem_limit = int(min(max(io_bytes + const_bytes + 4 * 2 ** 20, 8 * 2 ** 20), cap))

    out = pl.pallas_call(
        functools.partial(_bottleneck_kernel, W=W),
        out_shape=jax.ShapeDtypeStruct((N, Cout, HW), jnp.bfloat16),
        grid_spec=pltpu.PrefetchScalarGridSpec(
            num_scalar_prefetch=0,
            grid=(N,),                                      # 2 equal steps -> both v7x TCs busy
            in_specs=[
                pl.BlockSpec((1, Cin, HW), lambda n: (n, 0, 0)),      # x tile
                pl.BlockSpec((Cmid, Cin), lambda n: (0, 0)),          # w1 (resident)
                pl.BlockSpec((9, Cmid, Cmid), lambda n: (0, 0, 0)),   # w2 taps (resident)
                pl.BlockSpec((Cout, Cmid), lambda n: (0, 0)),         # w3 (resident)
                pl.BlockSpec((Cmid, 1), lambda n: (0, 0)),            # b1
                pl.BlockSpec((Cmid, 1), lambda n: (0, 0)),            # b2
                pl.BlockSpec((Cout, 1), lambda n: (0, 0)),            # b3
                pl.BlockSpec((9, 1, HW), lambda n: (0, 0, 0)),        # boundary masks
            ],
            out_specs=pl.BlockSpec((1, Cout, HW), lambda n: (n, 0, 0)),
        ),
        compiler_params=pltpu.CompilerParams(
            dimension_semantics=("parallel",),
            vmem_limit_bytes=vmem_limit),
    )(x, params["w1"], w2t, params["w3"],
      params["b1"], params["b2"], params["b3"], masks)
    return out.reshape(N, Cout, H, W)


def init_params(key, in_channels, out_channels, expansion=4, eps=1e-5):
    """Synthetic weights in PyTorch-style layouts with eval-mode BN folded in:
    w1: (Cmid, Cin), w2: (Cmid, Cmid, 3, 3) OIHW, w3: (Cout, Cmid) -- bf16 with
    BN scale folded into the output-channel axis; b1/b2/b3: (C, 1) f32."""
    Cmid = out_channels
    Cout = out_channels * expansion
    keys = jax.random.split(key, 15)

    w1 = jax.random.normal(keys[0], (Cmid, in_channels), jnp.float32) * 0.1
    w2 = jax.random.normal(keys[1], (Cmid, Cmid, 3, 3), jnp.float32) * 0.1
    w3 = jax.random.normal(keys[2], (Cout, Cmid), jnp.float32) * 0.1

    def bn_fold(kg, kb, km, kv, C):
        gamma = 1.0 + 0.1 * jax.random.normal(kg, (C,), jnp.float32)
        beta = 0.1 * jax.random.normal(kb, (C,), jnp.float32)
        mean = 0.1 * jax.random.normal(km, (C,), jnp.float32)
        var = jax.nn.softplus(jax.random.normal(kv, (C,), jnp.float32)) + 0.5
        scale = gamma / jnp.sqrt(var + eps)
        bias = beta - mean * scale
        return scale, bias

    s1, b1 = bn_fold(keys[3], keys[4], keys[5], keys[6], Cmid)
    s2, b2 = bn_fold(keys[7], keys[8], keys[9], keys[10], Cmid)
    s3, b3 = bn_fold(keys[11], keys[12], keys[13], keys[14], Cout)

    return dict(
        w1=(w1 * s1[:, None]).astype(jnp.bfloat16),
        w2=(w2 * s2[:, None, None, None]).astype(jnp.bfloat16),
        w3=(w3 * s3[:, None]).astype(jnp.bfloat16),
        b1=b1.reshape(Cmid, 1), b2=b2.reshape(Cmid, 1), b3=b3.reshape(Cout, 1),
    )


def _ref_forward(x_nchw, params):
    """Pure-JAX reference (lax convs, NCHW/OIHW) with the same bf16 rounding
    points as the kernel and f32 accumulation."""
    x = x_nchw.astype(jnp.bfloat16).astype(jnp.float32)

    def conv(inp, w, pad):
        return jax.lax.conv_general_dilated(
            inp, w.astype(jnp.float32), window_strides=(1, 1), padding=pad,
            dimension_numbers=("NCHW", "OIHW", "NCHW"))

    def bf16_round(v):
        return v.astype(jnp.bfloat16).astype(jnp.float32)

    b1 = params["b1"].reshape(1, -1, 1, 1)
    b2 = params["b2"].reshape(1, -1, 1, 1)
    b3 = params["b3"].reshape(1, -1, 1, 1)

    y = jnp.maximum(conv(x, params["w1"][:, :, None, None], "VALID") + b1, 0.0)
    y = bf16_round(y)
    y = jnp.maximum(conv(y, params["w2"], "SAME") + b2, 0.0)
    y = bf16_round(y)
    y = jnp.maximum(conv(y, params["w3"][:, :, None, None], "VALID") + b3 + x, 0.0)
    return bf16_round(y)      # kernel emits bf16


if __name__ == "__main__":
    # Bottleneck(in_channels=16, out_channels=4, stride=1, downsample=None):
    # output channels = 4 * expansion(4) = 16 == in_channels, so the identity
    # residual add is valid without a downsample branch.
    N, in_channels, out_channels, H, W = 2, 16, 4, 16, 16

    key = jax.random.PRNGKey(0)
    k_x, k_p = jax.random.split(key)
    x = jax.random.normal(k_x, (N, in_channels, H, W), jnp.float32)
    params = init_params(k_p, in_channels, out_channels)

    out = jax.block_until_ready(bottleneck_forward(x, params))
    ref = jax.block_until_ready(_ref_forward(x, params))

    assert out.shape == (N, out_channels * 4, H, W)
    np.testing.assert_allclose(np.asarray(out.astype(jnp.float32)),
                               np.asarray(ref), rtol=2e-2, atol=2e-2)
    print("KERNEL_OK")
</pallas_src>

<mosaic_0001>
module attributes {stable_mosaic.version = 11 : i64} {
  func.func @_bottleneck_kernel(%arg0: i32, %arg1: memref<1x16x256xbf16, #tpu.memory_space<vmem>>, %arg2: memref<4x16xbf16, #tpu.memory_space<vmem>>, %arg3: memref<9x4x4xbf16, #tpu.memory_space<vmem>>, %arg4: memref<16x4xbf16, #tpu.memory_space<vmem>>, %arg5: memref<4x1xf32, #tpu.memory_space<vmem>>, %arg6: memref<4x1xf32, #tpu.memory_space<vmem>>, %arg7: memref<16x1xf32, #tpu.memory_space<vmem>>, %arg8: memref<9x1x256xf32, #tpu.memory_space<vmem>>, %arg9: memref<1x16x256xbf16, #tpu.memory_space<vmem>>) attributes {dimension_semantics = [#tpu.dimension_semantics<parallel>], iteration_bounds = array<i64: 2>, scalar_prefetch = 0 : i64, scratch_operands = 0 : i64, tpu.core_type = #tpu.core_type<tc>, window_params = [{transform_indices = @transform_0, window_bounds = array<i64: 1, 16, 256>}, {pipeline_mode = #tpu.pipeline_mode<synchronous>, transform_indices = @transform_1, window_bounds = array<i64: 4, 16>}, {pipeline_mode = #tpu.pipeline_mode<synchronous>, transform_indices = @transform_2, window_bounds = array<i64: 9, 4, 4>}, {pipeline_mode = #tpu.pipeline_mode<synchronous>, transform_indices = @transform_3, window_bounds = array<i64: 16, 4>}, {pipeline_mode = #tpu.pipeline_mode<synchronous>, transform_indices = @transform_4, window_bounds = array<i64: 4, 1>}, {pipeline_mode = #tpu.pipeline_mode<synchronous>, transform_indices = @transform_5, window_bounds = array<i64: 4, 1>}, {pipeline_mode = #tpu.pipeline_mode<synchronous>, transform_indices = @transform_6, window_bounds = array<i64: 16, 1>}, {pipeline_mode = #tpu.pipeline_mode<synchronous>, transform_indices = @transform_7, window_bounds = array<i64: 9, 1, 256>}, {transform_indices = @transform_8, window_bounds = array<i64: 1, 16, 256>}]} {
    %c0 = arith.constant 0 : index
    %c0_0 = arith.constant 0 : index
    %c0_1 = arith.constant 0 : index
    %0 = vector.load %arg1[%c0, %c0_0, %c0_1] : memref<1x16x256xbf16, #tpu.memory_space<vmem>>, vector<1x16x256xbf16>
    %1 = vector.shape_cast %0 : vector<1x16x256xbf16> to vector<16x256xbf16>
    %c0_2 = arith.constant 0 : index
    %c0_3 = arith.constant 0 : index
    %2 = vector.load %arg2[%c0_2, %c0_3] : memref<4x16xbf16, #tpu.memory_space<vmem>>, vector<4x16xbf16>
    %cst = arith.constant dense<0.000000e+00> : vector<4x256xf32>
    %3 = tpu.matmul %2, %1, %cst {dimension_numbers = #tpu.dot_dimension_numbers<[1], [0], [0], [1], [0, 0, 1, 1], [], []>} : vector<4x16xbf16>, vector<16x256xbf16>, vector<4x256xf32> -> vector<4x256xf32>
    %c0_4 = arith.constant 0 : index
    %c0_5 = arith.constant 0 : index
    %4 = vector.load %arg5[%c0_4, %c0_5] : memref<4x1xf32, #tpu.memory_space<vmem>>, vector<4x1xf32>
    %5 = vector.broadcast %4 : vector<4x1xf32> to vector<4x256xf32>
    %6 = arith.addf %3, %5 : vector<4x256xf32>
    %cst_6 = arith.constant 0.000000e+00 : f32
    %7 = vector.broadcast %cst_6 : f32 to vector<4x256xf32>
    %8 = arith.maximumf %6, %7 : vector<4x256xf32>
    %cst_7 = arith.constant 0.000000e+00 : f32
    %9 = vector.broadcast %cst_7 : f32 to vector<4x256xf32>
    %c17_i32 = arith.constant 17 : i32
    %10 = tpu.dynamic_rotate %8 by %c17_i32 dim 1 : vector<4x256xf32>, i32 -> vector<4x256xf32>
    %c0_8 = arith.constant 0 : index
    %c0_9 = arith.constant 0 : index
    %c0_10 = arith.constant 0 : index
    %11 = vector.load %arg8[%c0_8, %c0_9, %c0_10] : memref<9x1x256xf32, #tpu.memory_space<vmem>>, vector<1x1x256xf32>
    %12 = vector.shape_cast %11 : vector<1x1x256xf32> to vector<1x256xf32>
    %13 = vector.broadcast %12 : vector<1x256xf32> to vector<4x256xf32>
    %14 = arith.mulf %10, %13 : vector<4x256xf32>
    %c0_11 = arith.constant 0 : index
    %c0_12 = arith.constant 0 : index
    %c0_13 = arith.constant 0 : index
    %15 = vector.load %arg3[%c0_11, %c0_12, %c0_13] : memref<9x4x4xbf16, #tpu.memory_space<vmem>>, vector<1x4x4xbf16>
    %16 = vector.shape_cast %15 : vector<1x4x4xbf16> to vector<4x4xbf16>
    %17 = arith.truncf %14 : vector<4x256xf32> to vector<4x256xbf16>
    %cst_14 = arith.constant dense<0.000000e+00> : vector<4x256xf32>
    %18 = tpu.matmul %16, %17, %cst_14 {dimension_numbers = #tpu.dot_dimension_numbers<[1], [0], [0], [1], [0, 0, 1, 1], [], []>} : vector<4x4xbf16>, vector<4x256xbf16>, vector<4x256xf32> -> vector<4x256xf32>
    %19 = arith.addf %9, %18 : vector<4x256xf32>
    %c16_i32 = arith.constant 16 : i32
    %20 = tpu.dynamic_rotate %8 by %c16_i32 dim 1 : vector<4x256xf32>, i32 -> vector<4x256xf32>
    %c1 = arith.constant 1 : index
    %c0_15 = arith.constant 0 : index
    %c0_16 = arith.constant 0 : index
    %21 = vector.load %arg8[%c1, %c0_15, %c0_16] : memref<9x1x256xf32, #tpu.memory_space<vmem>>, vector<1x1x256xf32>
    %22 = vector.shape_cast %21 : vector<1x1x256xf32> to vector<1x256xf32>
    %23 = vector.broadcast %22 : vector<1x256xf32> to vector<4x256xf32>
    %24 = arith.mulf %20, %23 : vector<4x256xf32>
    %c1_17 = arith.constant 1 : index
    %c0_18 = arith.constant 0 : index
    %c0_19 = arith.constant 0 : index
    %25 = vector.load %arg3[%c1_17, %c0_18, %c0_19] : memref<9x4x4xbf16, #tpu.memory_space<vmem>>, vector<1x4x4xbf16>
    %26 = vector.shape_cast %25 : vector<1x4x4xbf16> to vector<4x4xbf16>
    %27 = arith.truncf %24 : vector<4x256xf32> to vector<4x256xbf16>
    %cst_20 = arith.constant dense<0.000000e+00> : vector<4x256xf32>
    %28 = tpu.matmul %26, %27, %cst_20 {dimension_numbers = #tpu.dot_dimension_numbers<[1], [0], [0], [1], [0, 0, 1, 1], [], []>} : vector<4x4xbf16>, vector<4x256xbf16>, vector<4x256xf32> -> vector<4x256xf32>
    %29 = arith.addf %19, %28 : vector<4x256xf32>
    %c15_i32 = arith.constant 15 : i32
    %30 = tpu.dynamic_rotate %8 by %c15_i32 dim 1 : vector<4x256xf32>, i32 -> vector<4x256xf32>
    %c2 = arith.constant 2 : index
    %c0_21 = arith.constant 0 : index
    %c0_22 = arith.constant 0 : index
    %31 = vector.load %arg8[%c2, %c0_21, %c0_22] : memref<9x1x256xf32, #tpu.memory_space<vmem>>, vector<1x1x256xf32>
    %32 = vector.shape_cast %31 : vector<1x1x256xf32> to vector<1x256xf32>
    %33 = vector.broadcast %32 : vector<1x256xf32> to vector<4x256xf32>
    %34 = arith.mulf %30, %33 : vector<4x256xf32>
    %c2_23 = arith.constant 2 : index
    %c0_24 = arith.constant 0 : index
    %c0_25 = arith.constant 0 : index
    %35 = vector.load %arg3[%c2_23, %c0_24, %c0_25] : memref<9x4x4xbf16, #tpu.memory_space<vmem>>, vector<1x4x4xbf16>
    %36 = vector.shape_cast %35 : vector<1x4x4xbf16> to vector<4x4xbf16>
    %37 = arith.truncf %34 : vector<4x256xf32> to vector<4x256xbf16>
    %cst_26 = arith.constant dense<0.000000e+00> : vector<4x256xf32>
    %38 = tpu.matmul %36, %37, %cst_26 {dimension_numbers = #tpu.dot_dimension_numbers<[1], [0], [0], [1], [0, 0, 1, 1], [], []>} : vector<4x4xbf16>, vector<4x256xbf16>, vector<4x256xf32> -> vector<4x256xf32>
    %39 = arith.addf %29, %38 : vector<4x256xf32>
    %c1_i32 = arith.constant 1 : i32
    %40 = tpu.dynamic_rotate %8 by %c1_i32 dim 1 : vector<4x256xf32>, i32 -> vector<4x256xf32>
    %c3 = arith.constant 3 : index
    %c0_27 = arith.constant 0 : index
    %c0_28 = arith.constant 0 : index
    %41 = vector.load %arg8[%c3, %c0_27, %c0_28] : memref<9x1x256xf32, #tpu.memory_space<vmem>>, vector<1x1x256xf32>
    %42 = vector.shape_cast %41 : vector<1x1x256xf32> to vector<1x256xf32>
    %43 = vector.broadcast %42 : vector<1x256xf32> to vector<4x256xf32>
    %44 = arith.mulf %40, %43 : vector<4x256xf32>
    %c3_29 = arith.constant 3 : index
    %c0_30 = arith.constant 0 : index
    %c0_31 = arith.constant 0 : index
    %45 = vector.load %arg3[%c3_29, %c0_30, %c0_31] : memref<9x4x4xbf16, #tpu.memory_space<vmem>>, vector<1x4x4xbf16>
    %46 = vector.shape_cast %45 : vector<1x4x4xbf16> to vector<4x4xbf16>
    %47 = arith.truncf %44 : vector<4x256xf32> to vector<4x256xbf16>
    %cst_32 = arith.constant dense<0.000000e+00> : vector<4x256xf32>
    %48 = tpu.matmul %46, %47, %cst_32 {dimension_numbers = #tpu.dot_dimension_numbers<[1], [0], [0], [1], [0, 0, 1, 1], [], []>} : vector<4x4xbf16>, vector<4x256xbf16>, vector<4x256xf32> -> vector<4x256xf32>
    %49 = arith.addf %39, %48 : vector<4x256xf32>
    %c4 = arith.constant 4 : index
    %c0_33 = arith.constant 0 : index
    %c0_34 = arith.constant 0 : index
    %50 = vector.load %arg3[%c4, %c0_33, %c0_34] : memref<9x4x4xbf16, #tpu.memory_space<vmem>>, vector<1x4x4xbf16>
    %51 = vector.shape_cast %50 : vector<1x4x4xbf16> to vector<4x4xbf16>
    %52 = arith.truncf %8 : vector<4x256xf32> to vector<4x256xbf16>
    %cst_35 = arith.constant dense<0.000000e+00> : vector<4x256xf32>
    %53 = tpu.matmul %51, %52, %cst_35 {dimension_numbers = #tpu.dot_dimension_numbers<[1], [0], [0], [1], [0, 0, 1, 1], [], []>} : vector<4x4xbf16>, vector<4x256xbf16>, vector<4x256xf32> -> vector<4x256xf32>
    %54 = arith.addf %49, %53 : vector<4x256xf32>
    %c255_i32 = arith.constant 255 : i32
    %55 = tpu.dynamic_rotate %8 by %c255_i32 dim 1 : vector<4x256xf32>, i32 -> vector<4x256xf32>
    %c5 = arith.constant 5 : index
    %c0_36 = arith.constant 0 : index
    %c0_37 = arith.constant 0 : index
    %56 = vector.load %arg8[%c5, %c0_36, %c0_37] : memref<9x1x256xf32, #tpu.memory_space<vmem>>, vector<1x1x256xf32>
    %57 = vector.shape_cast %56 : vector<1x1x256xf32> to vector<1x256xf32>
    %58 = vector.broadcast %57 : vector<1x256xf32> to vector<4x256xf32>
    %59 = arith.mulf %55, %58 : vector<4x256xf32>
    %c5_38 = arith.constant 5 : index
    %c0_39 = arith.constant 0 : index
    %c0_40 = arith.constant 0 : index
    %60 = vector.load %arg3[%c5_38, %c0_39, %c0_40] : memref<9x4x4xbf16, #tpu.memory_space<vmem>>, vector<1x4x4xbf16>
    %61 = vector.shape_cast %60 : vector<1x4x4xbf16> to vector<4x4xbf16>
    %62 = arith.truncf %59 : vector<4x256xf32> to vector<4x256xbf16>
    %cst_41 = arith.constant dense<0.000000e+00> : vector<4x256xf32>
    %63 = tpu.matmul %61, %62, %cst_41 {dimension_numbers = #tpu.dot_dimension_numbers<[1], [0], [0], [1], [0, 0, 1, 1], [], []>} : vector<4x4xbf16>, vector<4x256xbf16>, vector<4x256xf32> -> vector<4x256xf32>
    %64 = arith.addf %54, %63 : vector<4x256xf32>
    %c241_i32 = arith.constant 241 : i32
    %65 = tpu.dynamic_rotate %8 by %c241_i32 dim 1 : vector<4x256xf32>, i32 -> vector<4x256xf32>
    %c6 = arith.constant 6 : index
    %c0_42 = arith.constant 0 : index
    %c0_43 = arith.constant 0 : index
    %66 = vector.load %arg8[%c6, %c0_42, %c0_43] : memref<9x1x256xf32, #tpu.memory_space<vmem>>, vector<1x1x256xf32>
    %67 = vector.shape_cast %66 : vector<1x1x256xf32> to vector<1x256xf32>
    %68 = vector.broadcast %67 : vector<1x256xf32> to vector<4x256xf32>
    %69 = arith.mulf %65, %68 : vector<4x256xf32>
    %c6_44 = arith.constant 6 : index
    %c0_45 = arith.constant 0 : index
    %c0_46 = arith.constant 0 : index
    %70 = vector.load %arg3[%c6_44, %c0_45, %c0_46] : memref<9x4x4xbf16, #tpu.memory_space<vmem>>, vector<1x4x4xbf16>
    %71 = vector.shape_cast %70 : vector<1x4x4xbf16> to vector<4x4xbf16>
    %72 = arith.truncf %69 : vector<4x256xf32> to vector<4x256xbf16>
    %cst_47 = arith.constant dense<0.000000e+00> : vector<4x256xf32>
    %73 = tpu.matmul %71, %72, %cst_47 {dimension_numbers = #tpu.dot_dimension_numbers<[1], [0], [0], [1], [0, 0, 1, 1], [], []>} : vector<4x4xbf16>, vector<4x256xbf16>, vector<4x256xf32> -> vector<4x256xf32>
    %74 = arith.addf %64, %73 : vector<4x256xf32>
    %c240_i32 = arith.constant 240 : i32
    %75 = tpu.dynamic_rotate %8 by %c240_i32 dim 1 : vector<4x256xf32>, i32 -> vector<4x256xf32>
    %c7 = arith.constant 7 : index
    %c0_48 = arith.constant 0 : index
    %c0_49 = arith.constant 0 : index
    %76 = vector.load %arg8[%c7, %c0_48, %c0_49] : memref<9x1x256xf32, #tpu.memory_space<vmem>>, vector<1x1x256xf32>
    %77 = vector.shape_cast %76 : vector<1x1x256xf32> to vector<1x256xf32>
    %78 = vector.broadcast %77 : vector<1x256xf32> to vector<4x256xf32>
    %79 = arith.mulf %75, %78 : vector<4x256xf32>
    %c7_50 = arith.constant 7 : index
    %c0_51 = arith.constant 0 : index
    %c0_52 = arith.constant 0 : index
    %80 = vector.load %arg3[%c7_50, %c0_51, %c0_52] : memref<9x4x4xbf16, #tpu.memory_space<vmem>>, vector<1x4x4xbf16>
    %81 = vector.shape_cast %80 : vector<1x4x4xbf16> to vector<4x4xbf16>
    %82 = arith.truncf %79 : vector<4x256xf32> to vector<4x256xbf16>
    %cst_53 = arith.constant dense<0.000000e+00> : vector<4x256xf32>
    %83 = tpu.matmul %81, %82, %cst_53 {dimension_numbers = #tpu.dot_dimension_numbers<[1], [0], [0], [1], [0, 0, 1, 1], [], []>} : vector<4x4xbf16>, vector<4x256xbf16>, vector<4x256xf32> -> vector<4x256xf32>
    %84 = arith.addf %74, %83 : vector<4x256xf32>
    %c239_i32 = arith.constant 239 : i32
    %85 = tpu.dynamic_rotate %8 by %c239_i32 dim 1 : vector<4x256xf32>, i32 -> vector<4x256xf32>
    %c8 = arith.constant 8 : index
    %c0_54 = arith.constant 0 : index
    %c0_55 = arith.constant 0 : index
    %86 = vector.load %arg8[%c8, %c0_54, %c0_55] : memref<9x1x256xf32, #tpu.memory_space<vmem>>, vector<1x1x256xf32>
    %87 = vector.shape_cast %86 : vector<1x1x256xf32> to vector<1x256xf32>
    %88 = vector.broadcast %87 : vector<1x256xf32> to vector<4x256xf32>
    %89 = arith.mulf %85, %88 : vector<4x256xf32>
    %c8_56 = arith.constant 8 : index
    %c0_57 = arith.constant 0 : index
    %c0_58 = arith.constant 0 : index
    %90 = vector.load %arg3[%c8_56, %c0_57, %c0_58] : memref<9x4x4xbf16, #tpu.memory_space<vmem>>, vector<1x4x4xbf16>
    %91 = vector.shape_cast %90 : vector<1x4x4xbf16> to vector<4x4xbf16>
    %92 = arith.truncf %89 : vector<4x256xf32> to vector<4x256xbf16>
    %cst_59 = arith.constant dense<0.000000e+00> : vector<4x256xf32>
    %93 = tpu.matmul %91, %92, %cst_59 {dimension_numbers = #tpu.dot_dimension_numbers<[1], [0], [0], [1], [0, 0, 1, 1], [], []>} : vector<4x4xbf16>, vector<4x256xbf16>, vector<4x256xf32> -> vector<4x256xf32>
    %94 = arith.addf %84, %93 : vector<4x256xf32>
    %c0_60 = arith.constant 0 : index
    %c0_61 = arith.constant 0 : index
    %95 = vector.load %arg6[%c0_60, %c0_61] : memref<4x1xf32, #tpu.memory_space<vmem>>, vector<4x1xf32>
    %96 = vector.broadcast %95 : vector<4x1xf32> to vector<4x256xf32>
    %97 = arith.addf %94, %96 : vector<4x256xf32>
    %cst_62 = arith.constant 0.000000e+00 : f32
    %98 = vector.broadcast %cst_62 : f32 to vector<4x256xf32>
    %99 = arith.maximumf %97, %98 : vector<4x256xf32>
    %100 = arith.truncf %99 : vector<4x256xf32> to vector<4x256xbf16>
    %c0_63 = arith.constant 0 : index
    %c0_64 = arith.constant 0 : index
    %101 = vector.load %arg4[%c0_63, %c0_64] : memref<16x4xbf16, #tpu.memory_space<vmem>>, vector<16x4xbf16>
    %cst_65 = arith.constant dense<0.000000e+00> : vector<16x256xf32>
    %102 = tpu.matmul %101, %100, %cst_65 {dimension_numbers = #tpu.dot_dimension_numbers<[1], [0], [0], [1], [0, 0, 1, 1], [], []>} : vector<16x4xbf16>, vector<4x256xbf16>, vector<16x256xf32> -> vector<16x256xf32>
    %c0_66 = arith.constant 0 : index
    %c0_67 = arith.constant 0 : index
    %103 = vector.load %arg7[%c0_66, %c0_67] : memref<16x1xf32, #tpu.memory_space<vmem>>, vector<16x1xf32>
    %104 = vector.broadcast %103 : vector<16x1xf32> to vector<16x256xf32>
    %105 = arith.addf %102, %104 : vector<16x256xf32>
    %106 = arith.extf %1 : vector<16x256xbf16> to vector<16x256xf32>
    %107 = arith.addf %105, %106 : vector<16x256xf32>
    %cst_68 = arith.constant 0.000000e+00 : f32
    %108 = vector.broadcast %cst_68 : f32 to vector<16x256xf32>
    %109 = arith.maximumf %107, %108 : vector<16x256xf32>
    %110 = arith.truncf %109 : vector<16x256xf32> to vector<16x256xbf16>
    %c0_69 = arith.constant 0 : index
    %c0_70 = arith.constant 0 : index
    %c0_71 = arith.constant 0 : index
    %111 = vector.load %arg9[%c0_69, %c0_70, %c0_71] : memref<1x16x256xbf16, #tpu.memory_space<vmem>>, vector<1x16x256xbf16>
    %112 = vector.shape_cast %111 : vector<1x16x256xbf16> to vector<16x256xbf16>
    %113 = vector.shape_cast %110 : vector<16x256xbf16> to vector<1x16x256xbf16>
    tpu.vector_store %arg9[%c0_69, %c0_70, %c0_71], %113 {strides = array<i32>} : memref<1x16x256xbf16, #tpu.memory_space<vmem>>, vector<1x16x256xbf16>,
    return
  }
  func.func @transform_0(%arg0: i32) -> (i32, i32, i32) {
    %c0_i32 = arith.constant 0 : i32
    %c0_i32_0 = arith.constant 0 : i32
    %c0_i32_1 = arith.constant 0 : i32
    return %arg0, %c0_i32, %c0_i32_0 : i32, i32, i32
  }
  func.func @transform_1(%arg0: i32) -> (i32, i32) {
    %c0_i32 = arith.constant 0 : i32
    %c0_i32_0 = arith.constant 0 : i32
    %c0_i32_1 = arith.constant 0 : i32
    return %c0_i32, %c0_i32_0 : i32, i32
  }
  func.func @transform_2(%arg0: i32) -> (i32, i32, i32) {
    %c0_i32 = arith.constant 0 : i32
    %c0_i32_0 = arith.constant 0 : i32
    %c0_i32_1 = arith.constant 0 : i32
    %c0_i32_2 = arith.constant 0 : i32
    return %c0_i32, %c0_i32_0, %c0_i32_1 : i32, i32, i32
  }
  func.func @transform_3(%arg0: i32) -> (i32, i32) {
    %c0_i32 = arith.constant 0 : i32
    %c0_i32_0 = arith.constant 0 : i32
    %c0_i32_1 = arith.constant 0 : i32
    return %c0_i32, %c0_i32_0 : i32, i32
  }
  func.func @transform_4(%arg0: i32) -> (i32, i32) {
    %c0_i32 = arith.constant 0 : i32
    %c0_i32_0 = arith.constant 0 : i32
    %c0_i32_1 = arith.constant 0 : i32
    return %c0_i32, %c0_i32_0 : i32, i32
  }
  func.func @transform_5(%arg0: i32) -> (i32, i32) {
    %c0_i32 = arith.constant 0 : i32
    %c0_i32_0 = arith.constant 0 : i32
    %c0_i32_1 = arith.constant 0 : i32
    return %c0_i32, %c0_i32_0 : i32, i32
  }
  func.func @transform_6(%arg0: i32) -> (i32, i32) {
    %c0_i32 = arith.constant 0 : i32
    %c0_i32_0 = arith.constant 0 : i32
    %c0_i32_1 = arith.constant 0 : i32
    return %c0_i32, %c0_i32_0 : i32, i32
  }
  func.func @transform_7(%arg0: i32) -> (i32, i32, i32) {
    %c0_i32 = arith.constant 0 : i32
    %c0_i32_0 = arith.constant 0 : i32
    %c0_i32_1 = arith.constant 0 : i32
    %c0_i32_2 = arith.constant 0 : i32
    return %c0_i32, %c0_i32_0, %c0_i32_1 : i32, i32, i32
  }
  func.func @transform_8(%arg0: i32) -> (i32, i32, i32) {
    %c0_i32 = arith.constant 0 : i32
    %c0_i32_0 = arith.constant 0 : i32
    %c0_i32_1 = arith.constant 0 : i32
    return %arg0, %c0_i32, %c0_i32_0 : i32, i32, i32
  }
}

</mosaic_0001>

<llo_original>
// kernel: tpu_custom_call.1
$region0: #{tpu_custom_call.1}
  #allocation0 [shape = 'u32[]', space=smem, size = 0x4, offset = 0x4, fixed_abs, tag = 'smem constant byte address 0x4 - core index']
  #allocation1 [shape = 'u32[144,128]{1,0:T(1,128)}', space=vmem, size = 0x12000, scoped, tag = 'internal scratch']
  %s0 = inlined_call_operand.vmem [shape: bf16[2,16,256], index: 0, kind: input, shape index: {}]
  %s1 = inlined_call_operand.vmem [shape: bf16[4,16], index: 1, kind: input, shape index: {}]
  %s2 = inlined_call_operand.vmem [shape: bf16[9,4,4], index: 2, kind: input, shape index: {}]
  %s3 = inlined_call_operand.vmem [shape: bf16[16,4], index: 3, kind: input, shape index: {}]
  %s4 = inlined_call_operand.vmem [shape: f32[4,1], index: 4, kind: input, shape index: {}]
  %s5 = inlined_call_operand.vmem [shape: f32[4,1], index: 5, kind: input, shape index: {}]
  %s6 = inlined_call_operand.vmem [shape: f32[16,1], index: 6, kind: input, shape index: {}]
  %s7 = inlined_call_operand.vmem [shape: f32[9,1,256], index: 7, kind: input, shape index: {}]
  %s8 = inlined_call_operand.hbm [shape: bf16[2,16,256], index: 8, kind: output, shape index: {}]
  %s9 = sld [smem:[#allocation0]]
  $region65: #{tpu_custom_call.1} parent=0
    _
  %s11 = ssub.s32 1, %s9
  %s12 = scalar_select 0, %s11, %s9
  $region1: #{tpu_custom_call.1} parent=0
    #allocation2 [shape = 'u8[16384]{0}', space=vmem, size = 0x4000, scoped, tag = 'output window, operand 0']
    #allocation3 [shape = 's32[2]{0}', space=sflag, size = 0x8, scoped, tag = 'scoped memory for tpu_custom_call.1']
    %13 = vsyncpa [#allocation3], 0
    %s14 = scalar_lea.sflag [#allocation3], 1
    %15 = vsyncpa %s14, 0
    loop: start=0, step=1, limit=4
    $region2: #{tpu_custom_call.1} parent=1 // loop_pre_header
      _
    $region3: #{tpu_custom_call.1} parent=1 // loop_header
      %s17 = sphi 0, %s21
      %p18 = scmp.ge.s32.totalorder %s17, 4
      %s27 = sphi 0, %s29
      %s30 = sphi 0, %s27
      %s31 = sphi 0, %s30
      %s47 = sphi 0, %s31
      %s51 = sphi 0, %s51
      %s53 = sphi 0, %s51
      %s54 = sphi 0, %s53
      %s68 = sphi 0, %s54
      %s72 = sphi 0, %s72
      %s74 = sphi 0, %s72
      %s75 = sphi 0, %s74
      %s89 = sphi 0, %s75
      %s93 = sphi 0, %s93
      %s95 = sphi 0, %s93
      %s96 = sphi 0, %s95
      %s110 = sphi 0, %s96
      %s114 = sphi 0, %s114
      %s116 = sphi 0, %s114
      %s117 = sphi 0, %s116
      %s131 = sphi 0, %s117
      %s135 = sphi 0, %s135
      %s137 = sphi 0, %s135
      %s138 = sphi 0, %s137
      %s152 = sphi 0, %s138
      %s156 = sphi 0, %s156
      %s158 = sphi 0, %s156
      %s159 = sphi 0, %s158
      %s173 = sphi 0, %s159
      %s177 = sphi 0, %s177
      %s179 = sphi 0, %s177
      %s180 = sphi 0, %s179
      %s194 = sphi 0, %s180
      %s200 = sphi 0, %s202
      %s203 = sphi 0, %s200
      %s204 = sphi 0, %s203
      %s220 = sphi 0, %s204
    $region4: #{tpu_custom_call.1} parent=1 // loop_header_branch
      %20 = sbr.rel (%p18) target = $region8
    $region5: #{tpu_custom_call.1} parent=1 // loop_body
      %s22 = ssub.s32 %s17, 1
      %s23 = ssub.s32 %s17, 2
      %s24 = sadd.s32 %s17, 1
      %s25 = ssub.s32 %s17, %s24
      %p26 = scmp.eq.s32.totalorder %s25, 0
      %s28 = sadd.s32 %s27, 1
      %s29 = scalar_select %p26, %s27, %s28
      %p32 = pneg %p26
      %p33 = scmp.eq.s32.totalorder %s17, 1
      %p34 = por %p32, %p33
      %p35 = scmp.ne.s32.totalorder %s27, %s30
      %p36 = scmp.eq.s32.totalorder %s17, 0
      %p37 = por %p35, %p36
      %p38 = scmp.ne.s32.totalorder %s27, %s30
      %p39 = scmp.eq.s32.totalorder %s22, 1
      %p40 = por %p38, %p39
      %p41 = scmp.ne.s32.totalorder %s30, %s31
      %p42 = scmp.eq.s32.totalorder %s22, 0
      %p43 = por %p41, %p42
      %p44 = scmp.ne.s32.totalorder %s30, %s31
      %p45 = scmp.eq.s32.totalorder %s23, 1
      %p46 = por %p44, %p45
      %p48 = scmp.ne.s32.totalorder %s31, %s47
      %p49 = scmp.eq.s32.totalorder %s23, 0
      %p50 = por %p48, %p49
      %s52 = sadd.s32 %s51, 1
      %p55 = scmp.eq.s32.totalorder %s17, 1
      %p56 = scmp.ne.s32.totalorder %s51, %s53
      %p57 = scmp.eq.s32.totalorder %s17, 0
      %p58 = por %p56, %p57
      %p59 = scmp.ne.s32.totalorder %s51, %s53
      %p60 = scmp.eq.s32.totalorder %s22, 1
      %p61 = por %p59, %p60
      %p62 = scmp.ne.s32.totalorder %s53, %s54
      %p63 = scmp.eq.s32.totalorder %s22, 0
      %p64 = por %p62, %p63
      %p65 = scmp.ne.s32.totalorder %s53, %s54
      %p66 = scmp.eq.s32.totalorder %s23, 1
      %p67 = por %p65, %p66
      %p69 = scmp.ne.s32.totalorder %s54, %s68
      %p70 = scmp.eq.s32.totalorder %s23, 0
      %p71 = por %p69, %p70
      %s73 = sadd.s32 %s72, 1
      %p76 = scmp.eq.s32.totalorder %s17, 1
      %p77 = scmp.ne.s32.totalorder %s72, %s74
      %p78 = scmp.eq.s32.totalorder %s17, 0
      %p79 = por %p77, %p78
      %p80 = scmp.ne.s32.totalorder %s72, %s74
      %p81 = scmp.eq.s32.totalorder %s22, 1
      %p82 = por %p80, %p81
      %p83 = scmp.ne.s32.totalorder %s74, %s75
      %p84 = scmp.eq.s32.totalorder %s22, 0
      %p85 = por %p83, %p84
      %p86 = scmp.ne.s32.totalorder %s74, %s75
      %p87 = scmp.eq.s32.totalorder %s23, 1
      %p88 = por %p86, %p87
      %p90 = scmp.ne.s32.totalorder %s75, %s89
      %p91 = scmp.eq.s32.totalorder %s23, 0
      %p92 = por %p90, %p91
      %s94 = sadd.s32 %s93, 1
      %p97 = scmp.eq.s32.totalorder %s17, 1
      %p98 = scmp.ne.s32.totalorder %s93, %s95
      %p99 = scmp.eq.s32.totalorder %s17, 0
      %p100 = por %p98, %p99
      %p101 = scmp.ne.s32.totalorder %s93, %s95
      %p102 = scmp.eq.s32.totalorder %s22, 1
      %p103 = por %p101, %p102
      %p104 = scmp.ne.s32.totalorder %s95, %s96
      %p105 = scmp.eq.s32.totalorder %s22, 0
      %p106 = por %p104, %p105
      %p107 = scmp.ne.s32.totalorder %s95, %s96
      %p108 = scmp.eq.s32.totalorder %s23, 1
      %p109 = por %p107, %p108
      %p111 = scmp.ne.s32.totalorder %s96, %s110
      %p112 = scmp.eq.s32.totalorder %s23, 0
      %p113 = por %p111, %p112
      %s115 = sadd.s32 %s114, 1
      %p118 = scmp.eq.s32.totalorder %s17, 1
      %p119 = scmp.ne.s32.totalorder %s114, %s116
      %p120 = scmp.eq.s32.totalorder %s17, 0
      %p121 = por %p119, %p120
      %p122 = scmp.ne.s32.totalorder %s114, %s116
      %p123 = scmp.eq.s32.totalorder %s22, 1
      %p124 = por %p122, %p123
      %p125 = scmp.ne.s32.totalorder %s116, %s117
      %p126 = scmp.eq.s32.totalorder %s22, 0
      %p127 = por %p125, %p126
      %p128 = scmp.ne.s32.totalorder %s116, %s117
      %p129 = scmp.eq.s32.totalorder %s23, 1
      %p130 = por %p128, %p129
      %p132 = scmp.ne.s32.totalorder %s117, %s131
      %p133 = scmp.eq.s32.totalorder %s23, 0
      %p134 = por %p132, %p133
      %s136 = sadd.s32 %s135, 1
      %p139 = scmp.eq.s32.totalorder %s17, 1
      %p140 = scmp.ne.s32.totalorder %s135, %s137
      %p141 = scmp.eq.s32.totalorder %s17, 0
      %p142 = por %p140, %p141
      %p143 = scmp.ne.s32.totalorder %s135, %s137
      %p144 = scmp.eq.s32.totalorder %s22, 1
      %p145 = por %p143, %p144
      %p146 = scmp.ne.s32.totalorder %s137, %s138
      %p147 = scmp.eq.s32.totalorder %s22, 0
      %p148 = por %p146, %p147
      %p149 = scmp.ne.s32.totalorder %s137, %s138
      %p150 = scmp.eq.s32.totalorder %s23, 1
      %p151 = por %p149, %p150
      %p153 = scmp.ne.s32.totalorder %s138, %s152
      %p154 = scmp.eq.s32.totalorder %s23, 0
      %p155 = por %p153, %p154
      %s157 = sadd.s32 %s156, 1
      %p160 = scmp.eq.s32.totalorder %s17, 1
      %p161 = scmp.ne.s32.totalorder %s156, %s158
      %p162 = scmp.eq.s32.totalorder %s17, 0
      %p163 = por %p161, %p162
      %p164 = scmp.ne.s32.totalorder %s156, %s158
      %p165 = scmp.eq.s32.totalorder %s22, 1
      %p166 = por %p164, %p165
      %p167 = scmp.ne.s32.totalorder %s158, %s159
      %p168 = scmp.eq.s32.totalorder %s22, 0
      %p169 = por %p167, %p168
      %p170 = scmp.ne.s32.totalorder %s158, %s159
      %p171 = scmp.eq.s32.totalorder %s23, 1
      %p172 = por %p170, %p171
      %p174 = scmp.ne.s32.totalorder %s159, %s173
      %p175 = scmp.eq.s32.totalorder %s23, 0
      %p176 = por %p174, %p175
      %s178 = sadd.s32 %s177, 1
      %p181 = scmp.eq.s32.totalorder %s17, 1
      %p182 = scmp.ne.s32.totalorder %s177, %s179
      %p183 = scmp.eq.s32.totalorder %s17, 0
      %p184 = por %p182, %p183
      %p185 = scmp.ne.s32.totalorder %s177, %s179
      %p186 = scmp.eq.s32.totalorder %s22, 1
      %p187 = por %p185, %p186
      %p188 = scmp.ne.s32.totalorder %s179, %s180
      %p189 = scmp.eq.s32.totalorder %s22, 0
      %p190 = por %p188, %p189
      %p191 = scmp.ne.s32.totalorder %s179, %s180
      %p192 = scmp.eq.s32.totalorder %s23, 1
      %p193 = por %p191, %p192
      %p195 = scmp.ne.s32.totalorder %s180, %s194
      %p196 = scmp.eq.s32.totalorder %s23, 0
      %p197 = por %p195, %p196
      %s198 = ssub.s32 %s17, %s24
      %p199 = scmp.eq.s32.totalorder %s198, 0
      %s201 = sadd.s32 %s200, 1
      %s202 = scalar_select %p199, %s200, %s201
      %p205 = pneg %p199
      %p206 = scmp.eq.s32.totalorder %s17, 1
      %p207 = por %p205, %p206
      %p208 = scmp.ne.s32.totalorder %s200, %s203
      %p209 = scmp.eq.s32.totalorder %s17, 0
      %p210 = por %p208, %p209
      %p211 = scmp.ne.s32.totalorder %s200, %s203
      %p212 = scmp.eq.s32.totalorder %s22, 1
      %p213 = por %p211, %p212
      %p214 = scmp.ne.s32.totalorder %s203, %s204
      %p215 = scmp.eq.s32.totalorder %s22, 0
      %p216 = por %p214, %p215
      %p217 = scmp.ne.s32.totalorder %s203, %s204
      %p218 = scmp.eq.s32.totalorder %s23, 1
      %p219 = por %p217, %p218
      %p221 = scmp.ne.s32.totalorder %s204, %s220
      %p222 = scmp.eq.s32.totalorder %s23, 0
      %p223 = por %p221, %p222
      %p224 = scmp.le.s32.totalorder 1, %s17
      %p225 = scmp.lt.s32.totalorder %s17, 3
      %p226 = pnand %p224, %p225
      %p227 = pneg %p226
      // Predicated region
      $region9: #{tpu_custom_call.1} parent=5 // pred_check
        _
      $region10: #{tpu_custom_call.1} parent=5 // pred_check_branch
        %229 = sbr.rel (%p226) target = $region12
      $region11: #{tpu_custom_call.1} parent=5 // pred_region
        %s230 = ssub.s32 %s17, 1
        // Predicated region
        $region13: #{tpu_custom_call.1} parent=11 // pred_check
          %p231 = pneg %p64
        $region14: #{tpu_custom_call.1} parent=11 // pred_check_branch
          %233 = sbr.rel (%p231) target = $region16
        $region15: #{tpu_custom_call.1} parent=11 // pred_region
          _
        $region16: #{tpu_custom_call.1} parent=11 // pred_fallthru
          _
        // Predicated region
        $region17: #{tpu_custom_call.1} parent=11 // pred_check
          %p234 = pneg %p85
        $region18: #{tpu_custom_call.1} parent=11 // pred_check_branch
          %236 = sbr.rel (%p234) target = $region20
        $region19: #{tpu_custom_call.1} parent=11 // pred_region
          _
        $region20: #{tpu_custom_call.1} parent=11 // pred_fallthru
          _
        // Predicated region
        $region21: #{tpu_custom_call.1} parent=11 // pred_check
          %p237 = pneg %p106
        $region22: #{tpu_custom_call.1} parent=11 // pred_check_branch
          %239 = sbr.rel (%p237) target = $region24
        $region23: #{tpu_custom_call.1} parent=11 // pred_region
          _
        $region24: #{tpu_custom_call.1} parent=11 // pred_fallthru
          _
        // Predicated region
        $region25: #{tpu_custom_call.1} parent=11 // pred_check
          %p240 = pneg %p127
        $region26: #{tpu_custom_call.1} parent=11 // pred_check_branch
          %242 = sbr.rel (%p240) target = $region28
        $region27: #{tpu_custom_call.1} parent=11 // pred_region
          _
        $region28: #{tpu_custom_call.1} parent=11 // pred_fallthru
          _
        // Predicated region
        $region29: #{tpu_custom_call.1} parent=11 // pred_check
          %p243 = pneg %p148
        $region30: #{tpu_custom_call.1} parent=11 // pred_check_branch
          %245 = sbr.rel (%p243) target = $region32
        $region31: #{tpu_custom_call.1} parent=11 // pred_region
          _
        $region32: #{tpu_custom_call.1} parent=11 // pred_fallthru
          _
        // Predicated region
        $region33: #{tpu_custom_call.1} parent=11 // pred_check
          %p246 = pneg %p169
        $region34: #{tpu_custom_call.1} parent=11 // pred_check_branch
          %248 = sbr.rel (%p246) target = $region36
        $region35: #{tpu_custom_call.1} parent=11 // pred_region
          _
        $region36: #{tpu_custom_call.1} parent=11 // pred_fallthru
          _
        // Predicated region
        $region37: #{tpu_custom_call.1} parent=11 // pred_check
          %p249 = pneg %p190
        $region38: #{tpu_custom_call.1} parent=11 // pred_check_branch
          %251 = sbr.rel (%p249) target = $region40
        $region39: #{tpu_custom_call.1} parent=11 // pred_region
          _
        $region40: #{tpu_custom_call.1} parent=11 // pred_fallthru
          _
      $region12: #{tpu_custom_call.1} parent=5 // pred_fallthru
        _
      %p252 = scmp.lt.s32.totalorder %s17, 2
      // Predicated region
      $region41: #{tpu_custom_call.1} parent=5 // pred_check
        %p253 = pneg %p252
      $region42: #{tpu_custom_call.1} parent=5 // pred_check_branch
        %255 = sbr.rel (%p253) target = $region44
      $region43: #{tpu_custom_call.1} parent=5 // pred_region
        // Predicated region
        $region45: #{tpu_custom_call.1} parent=43 // pred_check
          %p256 = pneg %p37
        $region46: #{tpu_custom_call.1} parent=43 // pred_check_branch
          %258 = sbr.rel (%p256) target = $region48
        $region47: #{tpu_custom_call.1} parent=43 // pred_region
          %p259 = scmp.lt.s32.totalorder %s17, 1
          %s260 = scalar_select %p259, %s17, 1
          %s261 = smul.addr %s260, 4
          %s262 = smul.addr %s261, 4
          %s263 = scalar_lea.vmem %s0, %s262
        $region48: #{tpu_custom_call.1} parent=43 // pred_fallthru
          _
      $region44: #{tpu_custom_call.1} parent=5 // pred_fallthru
        _
      %p264 = scmp.le.s32.totalorder 1, %s17
      %p265 = scmp.lt.s32.totalorder %s17, 3
      %p266 = pnand %p264, %p265
      %p267 = pneg %p266
      // Predicated region
      $region49: #{tpu_custom_call.1} parent=5 // pred_check
        _
      $region50: #{tpu_custom_call.1} parent=5 // pred_check_branch
        %269 = sbr.rel (%p266) target = $region52
      $region51: #{tpu_custom_call.1} parent=5 // pred_region
        %s270 = ssub.s32 %s17, 1
        %p271 = scmp.lt.s32.totalorder %s22, 1
        %s272 = scalar_select %p271, %s22, 1
        %s273 = smul.addr %s272, 4
        %s274 = smul.addr %s273, 4
        %s275 = scalar_lea.vmem %s0, %s274
        %p276 = pneg %p43
        %p277 = pneg %p40
        %p278 = pneg %p64
        %p279 = pneg %p61
        %p280 = pneg %p85
        %p281 = pneg %p82
        %p282 = pneg %p106
        %p283 = pneg %p103
        %p284 = pneg %p127
        %p285 = pneg %p124
        %p286 = pneg %p148
        %p287 = pneg %p145
        %p288 = pneg %p169
        %p289 = pneg %p166
        %p290 = pneg %p190
        %p291 = pneg %p187
        %p292 = pneg %p216
        %p293 = pneg %p213
        %s294 = sand.u32 %s203, 1
        %s295 = scalar_lea.sflag [#allocation3], %s294
        %s296 = sand.u32 %s203, 1
        %s297 = smul.addr %s296, 16
        %s298 = scalar_lea.vmem [#allocation2], %s297
        %p299 = scmp.lt.s32.totalorder %s22, 1
        %s300 = scalar_select %p299, %s22, 1
        %s301 = smul.addr %s300, 4
        %s302 = smul.addr %s301, 4
        %s303 = scalar_lea.vmem %s0, %s302
        %v305 = vld [vmem:[%s303] sm:$0xff]
        %v306 = vld [vmem:[%s303 + $0x8] sm:$0xff]
        %v307 = vld [vmem:[%s1] sm:$0x3]
        %v308 = vld [vmem:[%s4] sm:$0xf]
        %310 = vset.pattern.permute.xlu0 0
        %311 = vperm.xlu0 %310, %v308
        %v312 = vpop.permute.xlu0 %311
        %v316 = vunpack.c.l.b16 %v305
        %v317 = vunpack.c.h.b16 %v305
        %v318 = vunpack.c.l.b16 %v306
        %v319 = vunpack.c.h.b16 %v306
        %v320 = vpack.c.b16 %v318, %v316
        %v321 = vpack.c.b16 %v319, %v317
        %vm324 = vcmask 130048
        %v326 = vsel %vm324, %v307, 0
        %328 = vmatprep.subr.bf16.mxu0 %v321
        %329 = vmatpush1.bf16.msra.mxu0 %v320
        %330 = vmatprep.subr.bf16.mxu0 0
        %331 = vmatpush1.bf16.msra.mxu0 0
        %332 = vmatprep.subr.bf16.mxu0 0
        %333 = vmatpush1.bf16.msra.mxu0 0
        %334 = vmatprep.subr.bf16.mxu0 0
        %335 = vmatpush1.bf16.msra.mxu0 0
        %336 = vmatprep.subr.bf16.mxu0 0
        %337 = vmatpush1.bf16.msra.mxu0 0
        %338 = vmatprep.subr.bf16.mxu0 0
        %339 = vmatpush1.bf16.msra.mxu0 0
        %340 = vmatprep.subr.bf16.mxu0 0
        %341 = vmatpush1.bf16.msra.mxu0 0
        %342 = vmatprep.subr.bf16.mxu0 0
        %343 = vmatpush1.bf16.msra.mxu0 0
        %344 = vmatprep.subr.bf16.mxu0 0
        %345 = vmatpush1.bf16.msra.mxu0 0
        %346 = vmatprep.subr.bf16.mxu0 0
        %347 = vmatpush1.bf16.msra.mxu0 0
        %348 = vmatprep.subr.bf16.mxu0 0
        %349 = vmatpush1.bf16.msra.mxu0 0
        %350 = vmatprep.subr.bf16.mxu0 0
        %351 = vmatpush1.bf16.msra.mxu0 0
        %352 = vmatprep.subr.bf16.mxu0 0
        %353 = vmatpush1.bf16.msra.mxu0 0
        %354 = vmatprep.subr.bf16.mxu0 0
        %355 = vmatpush1.bf16.msra.mxu0 0
        %356 = vmatprep.subr.bf16.mxu0 0
        %357 = vmatpush1.bf16.msra.mxu0 0
        %358 = vmatprep.subr.bf16.mxu0 0
        %359 = vmatpush1.bf16.msra.mxu0 0
        %360 = vmatprep.mubr.bf16.mxu0 0
        %361 = vmatmul.mubr.bf16.gmra.mrb[0].mxu0 %v326
        %v362 = vpop.f32.mrb[0].mxu0
        %v363 = vadd.f32 %v312, %v362
        %v364 = vpop.f32.mrb[0].mxu0
        %v365 = vadd.f32 %v312, %v364
        %v366 = vpop.f32.mrb[0].mxu0
        %v367 = vpop.f32.mrb[0].mxu0
        %368 = vdwg.mxu0
        %v369 = vmax.f32 %v363, 0.0
        %v370 = vmax.f32 %v365, 0.0
        %371 = vrot.lane.b32.xlu0 %v369, 17
        %v372 = vpop.permute.xlu0 %371
        %373 = vrot.lane.b32.xlu0 %v370, 17
        %v374 = vpop.permute.xlu0 %373
        %v375 = vlaneseq
        %v376 = vand.u32 %v375, 127
        %vm377 = vcmp.lt.s32.totalorder %v376, 17
        %v378 = vsel %vm377, %v372, %v374
        %v379 = vsel %vm377, %v374, %v372
        %v380 = vld [vmem:[%s7] sm:$0x3]
        %v382 = vlaneseq
        %v383 = vshrl.u32 %v382, 7
        %v384 = vsub.s32 0, %v383
        %v385 = vrot.slane %v380, %v384
        %v386 = vlaneseq
        %v387 = vshrl.u32 %v386, 7
        %v388 = vsub.s32 1, %v387
        %v389 = vrot.slane %v380, %v388
        %v392 = vmul.f32 %v379, %v385
        %v393 = vmul.f32 %v378, %v389
        %v394 = vld [vmem:[%s2] sm:$0x3]
        %v395 = vpack.c.bf16 %v392, %v392
        %v396 = vpack.c.bf16 %v393, %v393
        %397 = vrot.lane.b32.xlu0 %v369, 16
        %v398 = vpop.permute.xlu0 %397
        %399 = vrot.lane.b32.xlu0 %v370, 16
        %v400 = vpop.permute.xlu0 %399
        %vm401 = vcmp.lt.s32.totalorder %v376, 16
        %v402 = vsel %vm401, %v398, %v400
        %v403 = vsel %vm401, %v400, %v398
        %s404 = scalar_lea.vmem %s7, 2
        %v405 = vld [vmem:[%s404] sm:$0x3]
        %v407 = vlaneseq
        %v408 = vshrl.u32 %v407, 7
        %v409 = vsub.s32 0, %v408
        %v410 = vrot.slane %v405, %v409
        %v411 = vlaneseq
        %v412 = vshrl.u32 %v411, 7
        %v413 = vsub.s32 1, %v412
        %v414 = vrot.slane %v405, %v413
        %v417 = vmul.f32 %v403, %v410
        %v418 = vmul.f32 %v402, %v414
        %s419 = scalar_lea.vmem %s2, 2
        %v420 = vld [vmem:[%s419] sm:$0x3]
        %v421 = vpack.c.bf16 %v417, %v417
        %v422 = vpack.c.bf16 %v418, %v418
        %vm423 = vcmask 31744
        %v425 = vsel %vm423, %v420, 0
        %vm427 = vcmask 1041408
        %v429 = vsel %vm427, %v421, 0
        %v432 = vsel %vm427, %v422, 0
        %434 = vmatprep.subr.bf16.mxu0 %v432
        %435 = vmatpush1.bf16.msra.mxu0 %v429
        %436 = vmatprep.subr.bf16.mxu0 0
        %437 = vmatpush1.bf16.msra.mxu0 0
        %438 = vmatprep.subr.bf16.mxu0 0
        %439 = vmatpush1.bf16.msra.mxu0 0
        %440 = vmatprep.subr.bf16.mxu0 0
        %441 = vmatpush1.bf16.msra.mxu0 0
        %442 = vmatprep.subr.bf16.mxu0 0
        %443 = vmatpush1.bf16.msra.mxu0 0
        %444 = vmatprep.subr.bf16.mxu0 0
        %445 = vmatpush1.bf16.msra.mxu0 0
        %446 = vmatprep.subr.bf16.mxu0 0
        %447 = vmatpush1.bf16.msra.mxu0 0
        %448 = vmatprep.subr.bf16.mxu0 0
        %449 = vmatpush1.bf16.msra.mxu0 0
        %450 = vmatprep.subr.bf16.mxu0 0
        %451 = vmatpush1.bf16.msra.mxu0 0
        %452 = vmatprep.subr.bf16.mxu0 0
        %453 = vmatpush1.bf16.msra.mxu0 0
        %454 = vmatprep.subr.bf16.mxu0 0
        %455 = vmatpush1.bf16.msra.mxu0 0
        %456 = vmatprep.subr.bf16.mxu0 0
        %457 = vmatpush1.bf16.msra.mxu0 0
        %458 = vmatprep.subr.bf16.mxu0 0
        %459 = vmatpush1.bf16.msra.mxu0 0
        %460 = vmatprep.subr.bf16.mxu0 0
        %461 = vmatpush1.bf16.msra.mxu0 0
        %462 = vmatprep.subr.bf16.mxu0 0
        %463 = vmatpush1.bf16.msra.mxu0 0
        %464 = vmatprep.subr.bf16.mxu0 0
        %465 = vmatpush1.bf16.msra.mxu0 0
        %466 = vmatprep.mubr.bf16.mxu0 0
        %467 = vmatmul.mubr.bf16.gmra.mrb[0].mxu0 %v425
        %v468 = vpop.f32.mrb[0].mxu0
        %v469 = vadd.f32 0.0, %v468
        %v470 = vpop.f32.mrb[0].mxu0
        %v471 = vadd.f32 0.0, %v470
        %v472 = vpop.f32.mrb[0].mxu0
        %v473 = vpop.f32.mrb[0].mxu0
        %474 = vdwg.mxu0
        %v476 = vsel %vm423, %v394, 0
        %v479 = vsel %vm427, %v395, 0
        %v482 = vsel %vm427, %v396, 0
        %484 = vmatprep.subr.bf16.mxu0 %v482
        %485 = vmatpush1.bf16.msra.mxu0 %v479
        %486 = vmatprep.subr.bf16.mxu0 0
        %487 = vmatpush1.bf16.msra.mxu0 0
        %488 = vmatprep.subr.bf16.mxu0 0
        %489 = vmatpush1.bf16.msra.mxu0 0
        %490 = vmatprep.subr.bf16.mxu0 0
        %491 = vmatpush1.bf16.msra.mxu0 0
        %492 = vmatprep.subr.bf16.mxu0 0
        %493 = vmatpush1.bf16.msra.mxu0 0
        %494 = vmatprep.subr.bf16.mxu0 0
        %495 = vmatpush1.bf16.msra.mxu0 0
        %496 = vmatprep.subr.bf16.mxu0 0
        %497 = vmatpush1.bf16.msra.mxu0 0
        %498 = vmatprep.subr.bf16.mxu0 0
        %499 = vmatpush1.bf16.msra.mxu0 0
        %500 = vmatprep.subr.bf16.mxu0 0
        %501 = vmatpush1.bf16.msra.mxu0 0
        %502 = vmatprep.subr.bf16.mxu0 0
        %503 = vmatpush1.bf16.msra.mxu0 0
        %504 = vmatprep.subr.bf16.mxu0 0
        %505 = vmatpush1.bf16.msra.mxu0 0
        %506 = vmatprep.subr.bf16.mxu0 0
        %507 = vmatpush1.bf16.msra.mxu0 0
        %508 = vmatprep.subr.bf16.mxu0 0
        %509 = vmatpush1.bf16.msra.mxu0 0
        %510 = vmatprep.subr.bf16.mxu0 0
        %511 = vmatpush1.bf16.msra.mxu0 0
        %512 = vmatprep.subr.bf16.mxu0 0
        %513 = vmatpush1.bf16.msra.mxu0 0
        %514 = vmatprep.subr.bf16.mxu0 0
        %515 = vmatpush1.bf16.msra.mxu0 0
        %516 = vmatprep.mubr.bf16.mxu0 0
        %517 = vmatmul.mubr.bf16.gmra.mrb[0].mxu0 %v476
        %v518 = vpop.f32.mrb[0].mxu0
        %v519 = vadd.f32 %v469, %v518
        %v520 = vpop.f32.mrb[0].mxu0
        %v521 = vadd.f32 %v471, %v520
        %v522 = vpop.f32.mrb[0].mxu0
        %v523 = vpop.f32.mrb[0].mxu0
        %524 = vdwg.mxu0
        %525 = vrot.lane.b32.xlu0 %v369, 15
        %v526 = vpop.permute.xlu0 %525
        %527 = vrot.lane.b32.xlu0 %v370, 15
        %v528 = vpop.permute.xlu0 %527
        %vm529 = vcmp.lt.s32.totalorder %v376, 15
        %v530 = vsel %vm529, %v526, %v528
        %v531 = vsel %vm529, %v528, %v526
        %s532 = scalar_lea.vmem %s7, 4
        %v533 = vld [vmem:[%s532] sm:$0x3]
        %v535 = vlaneseq
        %v536 = vshrl.u32 %v535, 7
        %v537 = vsub.s32 0, %v536
        %v538 = vrot.slane %v533, %v537
        %v539 = vlaneseq
        %v540 = vshrl.u32 %v539, 7
        %v541 = vsub.s32 1, %v540
        %v542 = vrot.slane %v533, %v541
        %v545 = vmul.f32 %v531, %v538
        %v546 = vmul.f32 %v530, %v542
        %s547 = scalar_lea.vmem %s2, 4
        %v548 = vld [vmem:[%s547] sm:$0x3]
        %v549 = vpack.c.bf16 %v545, %v545
        %v550 = vpack.c.bf16 %v546, %v546
        %v552 = vsel %vm423, %v548, 0
        %v555 = vsel %vm427, %v549, 0
        %v558 = vsel %vm427, %v550, 0
        %560 = vmatprep.subr.bf16.mxu0 %v558
        %561 = vmatpush1.bf16.msra.mxu0 %v555
        %562 = vmatprep.subr.bf16.mxu0 0
        %563 = vmatpush1.bf16.msra.mxu0 0
        %564 = vmatprep.subr.bf16.mxu0 0
        %565 = vmatpush1.bf16.msra.mxu0 0
        %566 = vmatprep.subr.bf16.mxu0 0
        %567 = vmatpush1.bf16.msra.mxu0 0
        %568 = vmatprep.subr.bf16.mxu0 0
        %569 = vmatpush1.bf16.msra.mxu0 0
        %570 = vmatprep.subr.bf16.mxu0 0
        %571 = vmatpush1.bf16.msra.mxu0 0
        %572 = vmatprep.subr.bf16.mxu0 0
        %573 = vmatpush1.bf16.msra.mxu0 0
        %574 = vmatprep.subr.bf16.mxu0 0
        %575 = vmatpush1.bf16.msra.mxu0 0
        %576 = vmatprep.subr.bf16.mxu0 0
        %577 = vmatpush1.bf16.msra.mxu0 0
        %578 = vmatprep.subr.bf16.mxu0 0
        %579 = vmatpush1.bf16.msra.mxu0 0
        %580 = vmatprep.subr.bf16.mxu0 0
        %581 = vmatpush1.bf16.msra.mxu0 0
        %582 = vmatprep.subr.bf16.mxu0 0
        %583 = vmatpush1.bf16.msra.mxu0 0
        %584 = vmatprep.subr.bf16.mxu0 0
        %585 = vmatpush1.bf16.msra.mxu0 0
        %586 = vmatprep.subr.bf16.mxu0 0
        %587 = vmatpush1.bf16.msra.mxu0 0
        %588 = vmatprep.subr.bf16.mxu0 0
        %589 = vmatpush1.bf16.msra.mxu0 0
        %590 = vmatprep.subr.bf16.mxu0 0
        %591 = vmatpush1.bf16.msra.mxu0 0
        %592 = vmatprep.mubr.bf16.mxu0 0
        %593 = vmatmul.mubr.bf16.gmra.mrb[0].mxu0 %v552
        %v594 = vpop.f32.mrb[0].mxu0
        %v595 = vadd.f32 0.0, %v594
        %v596 = vpop.f32.mrb[0].mxu0
        %v597 = vadd.f32 0.0, %v596
        %v598 = vpop.f32.mrb[0].mxu0
        %v599 = vpop.f32.mrb[0].mxu0
        %600 = vdwg.mxu0
        %v601 = vadd.f32 %v519, %v595
        %v602 = vadd.f32 %v521, %v597
        %603 = vrot.lane.b32.xlu0 %v369, 1
        %v604 = vpop.permute.xlu0 %603
        %605 = vrot.lane.b32.xlu0 %v370, 1
        %v606 = vpop.permute.xlu0 %605
        %vm607 = vcmp.lt.s32.totalorder %v376, 1
        %v608 = vsel %vm607, %v604, %v606
        %v609 = vsel %vm607, %v606, %v604
        %s610 = scalar_lea.vmem %s7, 6
        %v611 = vld [vmem:[%s610] sm:$0x3]
        %v613 = vlaneseq
        %v614 = vshrl.u32 %v613, 7
        %v615 = vsub.s32 0, %v614
        %v616 = vrot.slane %v611, %v615
        %v617 = vlaneseq
        %v618 = vshrl.u32 %v617, 7
        %v619 = vsub.s32 1, %v618
        %v620 = vrot.slane %v611, %v619
        %v623 = vmul.f32 %v609, %v616
        %v624 = vmul.f32 %v608, %v620
        %s625 = scalar_lea.vmem %s2, 6
        %v626 = vld [vmem:[%s625] sm:$0x3]
        %v627 = vpack.c.bf16 %v623, %v623
        %v628 = vpack.c.bf16 %v624, %v624
        %v630 = vsel %vm423, %v626, 0
        %v633 = vsel %vm427, %v627, 0
        %v636 = vsel %vm427, %v628, 0
        %638 = vmatprep.subr.bf16.mxu0 %v636
        %639 = vmatpush1.bf16.msra.mxu0 %v633
        %640 = vmatprep.subr.bf16.mxu0 0
        %641 = vmatpush1.bf16.msra.mxu0 0
        %642 = vmatprep.subr.bf16.mxu0 0
        %643 = vmatpush1.bf16.msra.mxu0 0
        %644 = vmatprep.subr.bf16.mxu0 0
        %645 = vmatpush1.bf16.msra.mxu0 0
        %646 = vmatprep.subr.bf16.mxu0 0
        %647 = vmatpush1.bf16.msra.mxu0 0
        %648 = vmatprep.subr.bf16.mxu0 0
        %649 = vmatpush1.bf16.msra.mxu0 0
        %650 = vmatprep.subr.bf16.mxu0 0
        %651 = vmatpush1.bf16.msra.mxu0 0
        %652 = vmatprep.subr.bf16.mxu0 0
        %653 = vmatpush1.bf16.msra.mxu0 0
        %654 = vmatprep.subr.bf16.mxu0 0
        %655 = vmatpush1.bf16.msra.mxu0 0
        %656 = vmatprep.subr.bf16.mxu0 0
        %657 = vmatpush1.bf16.msra.mxu0 0
        %658 = vmatprep.subr.bf16.mxu0 0
        %659 = vmatpush1.bf16.msra.mxu0 0
        %660 = vmatprep.subr.bf16.mxu0 0
        %661 = vmatpush1.bf16.msra.mxu0 0
        %662 = vmatprep.subr.bf16.mxu0 0
        %663 = vmatpush1.bf16.msra.mxu0 0
        %664 = vmatprep.subr.bf16.mxu0 0
        %665 = vmatpush1.bf16.msra.mxu0 0
        %666 = vmatprep.subr.bf16.mxu0 0
        %667 = vmatpush1.bf16.msra.mxu0 0
        %668 = vmatprep.subr.bf16.mxu0 0
        %669 = vmatpush1.bf16.msra.mxu0 0
        %670 = vmatprep.mubr.bf16.mxu0 0
        %671 = vmatmul.mubr.bf16.gmra.mrb[0].mxu0 %v630
        %v672 = vpop.f32.mrb[0].mxu0
        %v673 = vadd.f32 0.0, %v672
        %v674 = vpop.f32.mrb[0].mxu0
        %v675 = vadd.f32 0.0, %v674
        %v676 = vpop.f32.mrb[0].mxu0
        %v677 = vpop.f32.mrb[0].mxu0
        %678 = vdwg.mxu0
        %v679 = vadd.f32 %v601, %v673
        %v680 = vadd.f32 %v602, %v675
        %s681 = scalar_lea.vmem %s2, 8
        %v682 = vld [vmem:[%s681] sm:$0x3]
        %v683 = vpack.c.bf16 %v369, %v369
        %v684 = vpack.c.bf16 %v370, %v370
        %v686 = vsel %vm423, %v682, 0
        %v689 = vsel %vm427, %v683, 0
        %v692 = vsel %vm427, %v684, 0
        %694 = vmatprep.subr.bf16.mxu0 %v692
        %695 = vmatpush1.bf16.msra.mxu0 %v689
        %696 = vmatprep.subr.bf16.mxu0 0
        %697 = vmatpush1.bf16.msra.mxu0 0
        %698 = vmatprep.subr.bf16.mxu0 0
        %699 = vmatpush1.bf16.msra.mxu0 0
        %700 = vmatprep.subr.bf16.mxu0 0
        %701 = vmatpush1.bf16.msra.mxu0 0
        %702 = vmatprep.subr.bf16.mxu0 0
        %703 = vmatpush1.bf16.msra.mxu0 0
        %704 = vmatprep.subr.bf16.mxu0 0
        %705 = vmatpush1.bf16.msra.mxu0 0
        %706 = vmatprep.subr.bf16.mxu0 0
        %707 = vmatpush1.bf16.msra.mxu0 0
        %708 = vmatprep.subr.bf16.mxu0 0
        %709 = vmatpush1.bf16.msra.mxu0 0
        %710 = vmatprep.subr.bf16.mxu0 0
        %711 = vmatpush1.bf16.msra.mxu0 0
        %712 = vmatprep.subr.bf16.mxu0 0
        %713 = vmatpush1.bf16.msra.mxu0 0
        %714 = vmatprep.subr.bf16.mxu0 0
        %715 = vmatpush1.bf16.msra.mxu0 0
        %716 = vmatprep.subr.bf16.mxu0 0
        %717 = vmatpush1.bf16.msra.mxu0 0
        %718 = vmatprep.subr.bf16.mxu0 0
        %719 = vmatpush1.bf16.msra.mxu0 0
        %720 = vmatprep.subr.bf16.mxu0 0
        %721 = vmatpush1.bf16.msra.mxu0 0
        %722 = vmatprep.subr.bf16.mxu0 0
        %723 = vmatpush1.bf16.msra.mxu0 0
        %724 = vmatprep.subr.bf16.mxu0 0
        %725 = vmatpush1.bf16.msra.mxu0 0
        %726 = vmatprep.mubr.bf16.mxu0 0
        %727 = vmatmul.mubr.bf16.gmra.mrb[0].mxu0 %v686
        %v728 = vpop.f32.mrb[0].mxu0
        %v729 = vadd.f32 0.0, %v728
        %v730 = vpop.f32.mrb[0].mxu0
        %v731 = vadd.f32 0.0, %v730
        %v732 = vpop.f32.mrb[0].mxu0
        %v733 = vpop.f32.mrb[0].mxu0
        %734 = vdwg.mxu0
        %v735 = vadd.f32 %v679, %v729
        %v736 = vadd.f32 %v680, %v731
        %737 = vrot.lane.b32.xlu0 %v369, 127
        %v738 = vpop.permute.xlu0 %737
        %739 = vrot.lane.b32.xlu0 %v370, 127
        %v740 = vpop.permute.xlu0 %739
        %vm741 = vcmp.lt.s32.totalorder %v376, 127
        %v742 = vsel %vm741, %v738, %v740
        %v743 = vsel %vm741, %v740, %v738
        %s744 = scalar_lea.vmem %s7, 10
        %v745 = vld [vmem:[%s744] sm:$0x3]
        %v747 = vlaneseq
        %v748 = vshrl.u32 %v747, 7
        %v749 = vsub.s32 0, %v748
        %v750 = vrot.slane %v745, %v749
        %v751 = vlaneseq
        %v752 = vshrl.u32 %v751, 7
        %v753 = vsub.s32 1, %v752
        %v754 = vrot.slane %v745, %v753
        %v757 = vmul.f32 %v742, %v750
        %v758 = vmul.f32 %v743, %v754
        %s759 = scalar_lea.vmem %s2, 10
        %v760 = vld [vmem:[%s759] sm:$0x3]
        %v761 = vpack.c.bf16 %v757, %v757
        %v762 = vpack.c.bf16 %v758, %v758
        %v764 = vsel %vm423, %v760, 0
        %v767 = vsel %vm427, %v761, 0
        %v770 = vsel %vm427, %v762, 0
        %772 = vmatprep.subr.bf16.mxu0 %v770
        %773 = vmatpush1.bf16.msra.mxu0 %v767
        %774 = vmatprep.subr.bf16.mxu0 0
        %775 = vmatpush1.bf16.msra.mxu0 0
        %776 = vmatprep.subr.bf16.mxu0 0
        %777 = vmatpush1.bf16.msra.mxu0 0
        %778 = vmatprep.subr.bf16.mxu0 0
        %779 = vmatpush1.bf16.msra.mxu0 0
        %780 = vmatprep.subr.bf16.mxu0 0
        %781 = vmatpush1.bf16.msra.mxu0 0
        %782 = vmatprep.subr.bf16.mxu0 0
        %783 = vmatpush1.bf16.msra.mxu0 0
        %784 = vmatprep.subr.bf16.mxu0 0
        %785 = vmatpush1.bf16.msra.mxu0 0
        %786 = vmatprep.subr.bf16.mxu0 0
        %787 = vmatpush1.bf16.msra.mxu0 0
        %788 = vmatprep.subr.bf16.mxu0 0
        %789 = vmatpush1.bf16.msra.mxu0 0
        %790 = vmatprep.subr.bf16.mxu0 0
        %791 = vmatpush1.bf16.msra.mxu0 0
        %792 = vmatprep.subr.bf16.mxu0 0
        %793 = vmatpush1.bf16.msra.mxu0 0
        %794 = vmatprep.subr.bf16.mxu0 0
        %795 = vmatpush1.bf16.msra.mxu0 0
        %796 = vmatprep.subr.bf16.mxu0 0
        %797 = vmatpush1.bf16.msra.mxu0 0
        %798 = vmatprep.subr.bf16.mxu0 0
        %799 = vmatpush1.bf16.msra.mxu0 0
        %800 = vmatprep.subr.bf16.mxu0 0
        %801 = vmatpush1.bf16.msra.mxu0 0
        %802 = vmatprep.subr.bf16.mxu0 0
        %803 = vmatpush1.bf16.msra.mxu0 0
        %804 = vmatprep.mubr.bf16.mxu0 0
        %805 = vmatmul.mubr.bf16.gmra.mrb[0].mxu0 %v764
        %v806 = vpop.f32.mrb[0].mxu0
        %v807 = vadd.f32 0.0, %v806
        %v808 = vpop.f32.mrb[0].mxu0
        %v809 = vadd.f32 0.0, %v808
        %v810 = vpop.f32.mrb[0].mxu0
        %v811 = vpop.f32.mrb[0].mxu0
        %812 = vdwg.mxu0
        %v813 = vadd.f32 %v735, %v807
        %v814 = vadd.f32 %v736, %v809
        %815 = vrot.lane.b32.xlu0 %v369, 113
        %v816 = vpop.permute.xlu0 %815
        %817 = vrot.lane.b32.xlu0 %v370, 113
        %v818 = vpop.permute.xlu0 %817
        %vm819 = vcmp.lt.s32.totalorder %v376, 113
        %v820 = vsel %vm819, %v816, %v818
        %v821 = vsel %vm819, %v818, %v816
        %s822 = scalar_lea.vmem %s7, 12
        %v823 = vld [vmem:[%s822] sm:$0x3]
        %v825 = vlaneseq
        %v826 = vshrl.u32 %v825, 7
        %v827 = vsub.s32 0, %v826
        %v828 = vrot.slane %v823, %v827
        %v829 = vlaneseq
        %v830 = vshrl.u32 %v829, 7
        %v831 = vsub.s32 1, %v830
        %v832 = vrot.slane %v823, %v831
        %v835 = vmul.f32 %v820, %v828
        %v836 = vmul.f32 %v821, %v832
        %s837 = scalar_lea.vmem %s2, 12
        %v838 = vld [vmem:[%s837] sm:$0x3]
        %v839 = vpack.c.bf16 %v835, %v835
        %v840 = vpack.c.bf16 %v836, %v836
        %v842 = vsel %vm423, %v838, 0
        %v845 = vsel %vm427, %v839, 0
        %v848 = vsel %vm427, %v840, 0
        %850 = vmatprep.subr.bf16.mxu0 %v848
        %851 = vmatpush1.bf16.msra.mxu0 %v845
        %852 = vmatprep.subr.bf16.mxu0 0
        %853 = vmatpush1.bf16.msra.mxu0 0
        %854 = vmatprep.subr.bf16.mxu0 0
        %855 = vmatpush1.bf16.msra.mxu0 0
        %856 = vmatprep.subr.bf16.mxu0 0
        %857 = vmatpush1.bf16.msra.mxu0 0
        %858 = vmatprep.subr.bf16.mxu0 0
        %859 = vmatpush1.bf16.msra.mxu0 0
        %860 = vmatprep.subr.bf16.mxu0 0
        %861 = vmatpush1.bf16.msra.mxu0 0
        %862 = vmatprep.subr.bf16.mxu0 0
        %863 = vmatpush1.bf16.msra.mxu0 0
        %864 = vmatprep.subr.bf16.mxu0 0
        %865 = vmatpush1.bf16.msra.mxu0 0
        %866 = vmatprep.subr.bf16.mxu0 0
        %867 = vmatpush1.bf16.msra.mxu0 0
        %868 = vmatprep.subr.bf16.mxu0 0
        %869 = vmatpush1.bf16.msra.mxu0 0
        %870 = vmatprep.subr.bf16.mxu0 0
        %871 = vmatpush1.bf16.msra.mxu0 0
        %872 = vmatprep.subr.bf16.mxu0 0
        %873 = vmatpush1.bf16.msra.mxu0 0
        %874 = vmatprep.subr.bf16.mxu0 0
        %875 = vmatpush1.bf16.msra.mxu0 0
        %876 = vmatprep.subr.bf16.mxu0 0
        %877 = vmatpush1.bf16.msra.mxu0 0
        %878 = vmatprep.subr.bf16.mxu0 0
        %879 = vmatpush1.bf16.msra.mxu0 0
        %880 = vmatprep.subr.bf16.mxu0 0
        %881 = vmatpush1.bf16.msra.mxu0 0
        %882 = vmatprep.mubr.bf16.mxu0 0
        %883 = vmatmul.mubr.bf16.gmra.mrb[0].mxu0 %v842
        %v884 = vpop.f32.mrb[0].mxu0
        %v885 = vadd.f32 0.0, %v884
        %v886 = vpop.f32.mrb[0].mxu0
        %v887 = vadd.f32 0.0, %v886
        %v888 = vpop.f32.mrb[0].mxu0
        %v889 = vpop.f32.mrb[0].mxu0
        %890 = vdwg.mxu0
        %v891 = vadd.f32 %v813, %v885
        %v892 = vadd.f32 %v814, %v887
        %893 = vrot.lane.b32.xlu0 %v369, 112
        %v894 = vpop.permute.xlu0 %893
        %895 = vrot.lane.b32.xlu0 %v370, 112
        %v896 = vpop.permute.xlu0 %895
        %vm897 = vcmp.lt.s32.totalorder %v376, 112
        %v898 = vsel %vm897, %v894, %v896
        %v899 = vsel %vm897, %v896, %v894
        %s900 = scalar_lea.vmem %s7, 14
        %v901 = vld [vmem:[%s900] sm:$0x3]
        %v903 = vlaneseq
        %v904 = vshrl.u32 %v903, 7
        %v905 = vsub.s32 0, %v904
        %v906 = vrot.slane %v901, %v905
        %v907 = vlaneseq
        %v908 = vshrl.u32 %v907, 7
        %v909 = vsub.s32 1, %v908
        %v910 = vrot.slane %v901, %v909
        %v913 = vmul.f32 %v898, %v906
        %v914 = vmul.f32 %v899, %v910
        %s915 = scalar_lea.vmem %s2, 14
        %v916 = vld [vmem:[%s915] sm:$0x3]
        %v917 = vpack.c.bf16 %v913, %v913
        %v918 = vpack.c.bf16 %v914, %v914
        %v920 = vsel %vm423, %v916, 0
        %v923 = vsel %vm427, %v917, 0
        %v926 = vsel %vm427, %v918, 0
        %928 = vmatprep.subr.bf16.mxu0 %v926
        %929 = vmatpush1.bf16.msra.mxu0 %v923
        %930 = vmatprep.subr.bf16.mxu0 0
        %931 = vmatpush1.bf16.msra.mxu0 0
        %932 = vmatprep.subr.bf16.mxu0 0
        %933 = vmatpush1.bf16.msra.mxu0 0
        %934 = vmatprep.subr.bf16.mxu0 0
        %935 = vmatpush1.bf16.msra.mxu0 0
        %936 = vmatprep.subr.bf16.mxu0 0
        %937 = vmatpush1.bf16.msra.mxu0 0
        %938 = vmatprep.subr.bf16.mxu0 0
        %939 = vmatpush1.bf16.msra.mxu0 0
        %940 = vmatprep.subr.bf16.mxu0 0
        %941 = vmatpush1.bf16.msra.mxu0 0
        %942 = vmatprep.subr.bf16.mxu0 0
        %943 = vmatpush1.bf16.msra.mxu0 0
        %944 = vmatprep.subr.bf16.mxu0 0
        %945 = vmatpush1.bf16.msra.mxu0 0
        %946 = vmatprep.subr.bf16.mxu0 0
        %947 = vmatpush1.bf16.msra.mxu0 0
        %948 = vmatprep.subr.bf16.mxu0 0
        %949 = vmatpush1.bf16.msra.mxu0 0
        %950 = vmatprep.subr.bf16.mxu0 0
        %951 = vmatpush1.bf16.msra.mxu0 0
        %952 = vmatprep.subr.bf16.mxu0 0
        %953 = vmatpush1.bf16.msra.mxu0 0
        %954 = vmatprep.subr.bf16.mxu0 0
        %955 = vmatpush1.bf16.msra.mxu0 0
        %956 = vmatprep.subr.bf16.mxu0 0
        %957 = vmatpush1.bf16.msra.mxu0 0
        %958 = vmatprep.subr.bf16.mxu0 0
        %959 = vmatpush1.bf16.msra.mxu0 0
        %960 = vmatprep.mubr.bf16.mxu0 0
        %961 = vmatmul.mubr.bf16.gmra.mrb[0].mxu0 %v920
        %v962 = vpop.f32.mrb[0].mxu0
        %v963 = vadd.f32 0.0, %v962
        %v964 = vpop.f32.mrb[0].mxu0
        %v965 = vadd.f32 0.0, %v964
        %v966 = vpop.f32.mrb[0].mxu0
        %v967 = vpop.f32.mrb[0].mxu0
        %968 = vdwg.mxu0
        %v969 = vadd.f32 %v891, %v963
        %v970 = vadd.f32 %v892, %v965
        %971 = vrot.lane.b32.xlu0 %v369, 111
        %v972 = vpop.permute.xlu0 %971
        %973 = vrot.lane.b32.xlu0 %v370, 111
        %v974 = vpop.permute.xlu0 %973
        %vm975 = vcmp.lt.s32.totalorder %v376, 111
        %v976 = vsel %vm975, %v972, %v974
        %v977 = vsel %vm975, %v974, %v972
        %s978 = scalar_lea.vmem %s7, 16
        %v979 = vld [vmem:[%s978] sm:$0x3]
        %v981 = vlaneseq
        %v982 = vshrl.u32 %v981, 7
        %v983 = vsub.s32 0, %v982
        %v984 = vrot.slane %v979, %v983
        %v985 = vlaneseq
        %v986 = vshrl.u32 %v985, 7
        %v987 = vsub.s32 1, %v986
        %v988 = vrot.slane %v979, %v987
        %v991 = vmul.f32 %v976, %v984
        %v992 = vmul.f32 %v977, %v988
        %s993 = scalar_lea.vmem %s2, 16
        %v994 = vld [vmem:[%s993] sm:$0x3]
        %v995 = vpack.c.bf16 %v991, %v991
        %v996 = vpack.c.bf16 %v992, %v992
        %v998 = vsel %vm423, %v994, 0
        %v1001 = vsel %vm427, %v995, 0
        %v1004 = vsel %vm427, %v996, 0
        %1006 = vmatprep.subr.bf16.mxu0 %v1004
        %1007 = vmatpush1.bf16.msra.mxu0 %v1001
        %1008 = vmatprep.subr.bf16.mxu0 0
        %1009 = vmatpush1.bf16.msra.mxu0 0
        %1010 = vmatprep.subr.bf16.mxu0 0
        %1011 = vmatpush1.bf16.msra.mxu0 0
        %1012 = vmatprep.subr.bf16.mxu0 0
        %1013 = vmatpush1.bf16.msra.mxu0 0
        %1014 = vmatprep.subr.bf16.mxu0 0
        %1015 = vmatpush1.bf16.msra.mxu0 0
        %1016 = vmatprep.subr.bf16.mxu0 0
        %1017 = vmatpush1.bf16.msra.mxu0 0
        %1018 = vmatprep.subr.bf16.mxu0 0
        %1019 = vmatpush1.bf16.msra.mxu0 0
        %1020 = vmatprep.subr.bf16.mxu0 0
        %1021 = vmatpush1.bf16.msra.mxu0 0
        %1022 = vmatprep.subr.bf16.mxu0 0
        %1023 = vmatpush1.bf16.msra.mxu0 0
        %1024 = vmatprep.subr.bf16.mxu0 0
        %1025 = vmatpush1.bf16.msra.mxu0 0
        %1026 = vmatprep.subr.bf16.mxu0 0
        %1027 = vmatpush1.bf16.msra.mxu0 0
        %1028 = vmatprep.subr.bf16.mxu0 0
        %1029 = vmatpush1.bf16.msra.mxu0 0
        %1030 = vmatprep.subr.bf16.mxu0 0
        %1031 = vmatpush1.bf16.msra.mxu0 0
        %1032 = vmatprep.subr.bf16.mxu0 0
        %1033 = vmatpush1.bf16.msra.mxu0 0
        %1034 = vmatprep.subr.bf16.mxu0 0
        %1035 = vmatpush1.bf16.msra.mxu0 0
        %1036 = vmatprep.subr.bf16.mxu0 0
        %1037 = vmatpush1.bf16.msra.mxu0 0
        %1038 = vmatprep.mubr.bf16.mxu0 0
        %1039 = vmatmul.mubr.bf16.gmra.mrb[0].mxu0 %v998
        %v1040 = vpop.f32.mrb[0].mxu0
        %v1041 = vadd.f32 0.0, %v1040
        %v1042 = vpop.f32.mrb[0].mxu0
        %v1043 = vadd.f32 0.0, %v1042
        %v1044 = vpop.f32.mrb[0].mxu0
        %v1045 = vpop.f32.mrb[0].mxu0
        %1046 = vdwg.mxu0
        %v1047 = vadd.f32 %v969, %v1041
        %v1048 = vadd.f32 %v970, %v1043
        %v1049 = vld [vmem:[%s5] sm:$0xf]
        %1051 = vset.pattern.permute.xlu0 0
        %1052 = vperm.xlu0 %1051, %v1049
        %v1053 = vpop.permute.xlu0 %1052
        %v1055 = vadd.f32 %v1047, %v1053
        %v1056 = vadd.f32 %v1048, %v1053
        %v1057 = vmax.f32 %v1055, 0.0
        %v1058 = vmax.f32 %v1056, 0.0
        %v1059 = vpack.c.bf16 %v1057, %v1057
        %v1060 = vpack.c.bf16 %v1058, %v1058
        %v1061 = vld [vmem:[%s3] sm:$0xf]
        %v1062 = vld [vmem:[%s3 + $0x4] sm:$0xf]
        %v1063 = vld [vmem:[%s6] sm:$0xff]
        %v1064 = vld [vmem:[%s6 + $0x8] sm:$0xff]
        %1066 = vset.pattern.permute.xlu0 0
        %1067 = vperm.xlu0 %1066, %v1063
        %v1068 = vpop.permute.xlu0 %1067
        %1071 = vset.pattern.permute.xlu0 0
        %1072 = vperm.xlu0 %1071, %v1064
        %v1073 = vpop.permute.xlu0 %1072
        %v1077 = vunpack.c.l.b16 %v1061
        %v1078 = vunpack.c.l.b16 %v1062
        %v1079 = vpack.c.b16 %v1078, %v1077
        %v1081 = vsel %vm423, %v1079, 0
        %v1084 = vsel %vm427, %v1059, 0
        %v1087 = vsel %vm427, %v1060, 0
        %1089 = vmatprep.subr.bf16.mxu0 %v1087
        %1090 = vmatpush1.bf16.msra.mxu0 %v1084
        %1091 = vmatprep.subr.bf16.mxu0 0
        %1092 = vmatpush1.bf16.msra.mxu0 0
        %1093 = vmatprep.subr.bf16.mxu0 0
        %1094 = vmatpush1.bf16.msra.mxu0 0
        %1095 = vmatprep.subr.bf16.mxu0 0
        %1096 = vmatpush1.bf16.msra.mxu0 0
        %1097 = vmatprep.subr.bf16.mxu0 0
        %1098 = vmatpush1.bf16.msra.mxu0 0
        %1099 = vmatprep.subr.bf16.mxu0 0
        %1100 = vmatpush1.bf16.msra.mxu0 0
        %1101 = vmatprep.subr.bf16.mxu0 0
        %1102 = vmatpush1.bf16.msra.mxu0 0
        %1103 = vmatprep.subr.bf16.mxu0 0
        %1104 = vmatpush1.bf16.msra.mxu0 0
        %1105 = vmatprep.subr.bf16.mxu0 0
        %1106 = vmatpush1.bf16.msra.mxu0 0
        %1107 = vmatprep.subr.bf16.mxu0 0
        %1108 = vmatpush1.bf16.msra.mxu0 0
        %1109 = vmatprep.subr.bf16.mxu0 0
        %1110 = vmatpush1.bf16.msra.mxu0 0
        %1111 = vmatprep.subr.bf16.mxu0 0
        %1112 = vmatpush1.bf16.msra.mxu0 0
        %1113 = vmatprep.subr.bf16.mxu0 0
        %1114 = vmatpush1.bf16.msra.mxu0 0
        %1115 = vmatprep.subr.bf16.mxu0 0
        %1116 = vmatpush1.bf16.msra.mxu0 0
        %1117 = vmatprep.subr.bf16.mxu0 0
        %1118 = vmatpush1.bf16.msra.mxu0 0
        %1119 = vmatprep.subr.bf16.mxu0 0
        %1120 = vmatpush1.bf16.msra.mxu0 0
        %1121 = vmatprep.mubr.bf16.mxu0 0
        %1122 = vmatmul.mubr.bf16.gmra.mrb[0].mxu0 %v1081
        %v1123 = vpop.f32.mrb[0].mxu0
        %v1124 = vadd.f32 %v1068, %v1123
        %v1125 = vpop.f32.mrb[0].mxu0
        %v1126 = vadd.f32 %v1068, %v1125
        %v1127 = vpop.f32.mrb[0].mxu0
        %v1128 = vadd.f32 %v1073, %v1127
        %v1129 = vpop.f32.mrb[0].mxu0
        %v1130 = vadd.f32 %v1073, %v1129
        %1131 = vdwg.mxu0
        %v1132 = vunpack.c.l.bf16 %v305
        %v1133 = vunpack.c.h.bf16 %v305
        %v1134 = vunpack.c.l.bf16 %v306
        %v1135 = vunpack.c.h.bf16 %v306
        %v1136 = vadd.f32 %v1124, %v1132
        %v1137 = vadd.f32 %v1126, %v1133
        %v1138 = vadd.f32 %v1128, %v1134
        %v1139 = vadd.f32 %v1130, %v1135
        %v1140 = vmax.f32 %v1136, 0.0
        %v1141 = vmax.f32 %v1137, 0.0
        %v1142 = vmax.f32 %v1138, 0.0
        %v1143 = vmax.f32 %v1139, 0.0
        %v1144 = vpack.c.bf16 %v1142, %v1140
        %v1145 = vpack.c.bf16 %v1143, %v1141
        %v1148 = vunpack.c.l.b16 %v1144
        %v1149 = vunpack.c.l.b16 %v1145
        %v1150 = vunpack.c.h.b16 %v1144
        %v1151 = vunpack.c.h.b16 %v1145
        %v1152 = vpack.c.b16 %v1149, %v1148
        %v1153 = vpack.c.b16 %v1151, %v1150
        %1156 = vst [vmem:[%s298] sm:$0xff] %v1152
        %1157 = vst [vmem:[%s298 + $0x8] sm:$0xff] %v1153
        %s1158 = sand.u32 %s203, 1
        %s1159 = scalar_lea.sflag [#allocation3], %s1158
        %s1160 = sand.u32 %s203, 1
        %s1161 = smul.addr %s1160, 16
        %s1162 = scalar_lea.vmem [#allocation2], %s1161
        // Predicated region
        $region53: #{tpu_custom_call.1} parent=51 // pred_check
          %p1163 = pneg %p213
        $region54: #{tpu_custom_call.1} parent=51 // pred_check_branch
          %1165 = sbr.rel (%p1163) target = $region56
        $region55: #{tpu_custom_call.1} parent=51 // pred_region
          %s1167 = ssub.s32 256, 256
          %1168 = vsyncadd %s1159, %s1167
          %s1169 = smul.addr %s22, 4
          %s1170 = smul.addr %s1169, 64
          %s1171 = scalar_lea.hbm %s8, %s1170
          %s1172 = sshll.u32 %s1162, 4
          %s1173 = int_to_ptr.vmem [resolvable:$true] %s1172
          %1178 = dma.vmem_to_hbm [thread:$0]  %s1173, 256, %s1171, %s1159, 128, 128, 8
        $region56: #{tpu_custom_call.1} parent=51 // pred_fallthru
          _
      $region52: #{tpu_custom_call.1} parent=5 // pred_fallthru
        _
      %p1179 = scmp.le.s32.totalorder 2, %s17
      // Predicated region
      $region57: #{tpu_custom_call.1} parent=5 // pred_check
        %p1180 = pneg %p1179
      $region58: #{tpu_custom_call.1} parent=5 // pred_check_branch
        %1182 = sbr.rel (%p1180) target = $region60
      $region59: #{tpu_custom_call.1} parent=5 // pred_region
        %s1183 = ssub.s32 %s17, 2
        // Predicated region
        $region61: #{tpu_custom_call.1} parent=59 // pred_check
          %p1184 = pneg %p219
        $region62: #{tpu_custom_call.1} parent=59 // pred_check_branch
          %1186 = sbr.rel (%p1184) target = $region64
        $region63: #{tpu_custom_call.1} parent=59 // pred_region
          %s1187 = sand.u32 %s204, 1
          %s1188 = scalar_lea.sflag [#allocation3], %s1187
          %s1189 = sand.u32 %s204, 1
          %s1190 = smul.addr %s1189, 16
          %s1191 = scalar_lea.vmem [#allocation2], %s1190
          %1192 = dma.done %s1188, 256
        $region64: #{tpu_custom_call.1} parent=59 // pred_fallthru
          _
      $region60: #{tpu_custom_call.1} parent=5 // pred_fallthru
        _
    $region6: #{tpu_custom_call.1} parent=1 // loop_footer
      %s21 = sadd.s32 1, %s17
    $region7: #{tpu_custom_call.1} parent=1 // loop_footer_branch
      %16 = sbr.rel target = $region3
    $region8: #{tpu_custom_call.1} parent=1 // loop_exit
      _
    %1193 = vsyncpa [#allocation3], 1
    %s1194 = scalar_lea.sflag [#allocation3], 1
    %1195 = vsyncpa %s1194, 1

</llo_original>
